<compile_context>
chip_gen: v7x
topology: tpu7x:2x2x1
jax: 0.10.0
libtpu: 0.0.40
codegen_flags: <defaults>
</compile_context>

<pallas_src>
import numpy as np
import jax
import jax.numpy as jnp
from jax import lax
from jax.experimental import pallas as pl
from jax.experimental.pallas import tpu as pltpu

BN_EPS = 0.8
NEG_SLOPE = 0.2


# ------------------------------ Pallas kernel ------------------------------ #

def _conv_block(inp_ref, w_ref, ep_ref, layer, hin, win, cin, cout):
    """3x3 / stride-2 / pad-1 conv + bias + LeakyReLU(0.2) + eval-BN, one sample.

    inp_ref : ((hin+2)*(win+2), cin) f32 ref, zero-padded NHWC rows (flat h*w).
    w_ref   : (9*cin, cout) bf16 fused-tap weight, K ordered (kh, kw, cin).
    ep_ref  : (13+ds*ds, 128) f32 packed epilogue params.
    Returns (ho*wo, cout) f32 rows in (h, w) row-major order.
    """
    ho_n, wo_n = hin // 2, win // 2
    wp = win + 2
    taps = []
    for kh in range(3):
        for kw in range(3):
            rows = []
            for ho in range(ho_n):
                start = (2 * ho + kh) * wp + kw
                if wo_n == 1:
                    rows.append(inp_ref[pl.ds(start, 1), :])
                else:
                    # strided read: width stride 2 over the padded row
                    rows.append(inp_ref[pl.ds(start, wo_n, stride=2), :])
            taps.append(rows[0] if ho_n == 1 else jnp.concatenate(rows, axis=0))
    patch = jnp.concatenate(taps, axis=1)                     # (M, 9*cin) f32
    acc = jnp.dot(patch.astype(jnp.bfloat16), w_ref[...],     # single fused dot
                  preferred_element_type=jnp.float32)         # (M, cout) f32
    bias = ep_ref[pl.ds(3 * layer + 0, 1), pl.ds(0, cout)]
    scale = ep_ref[pl.ds(3 * layer + 1, 1), pl.ds(0, cout)]
    shift = ep_ref[pl.ds(3 * layer + 2, 1), pl.ds(0, cout)]
    y = acc + bias
    y = jnp.where(y >= 0.0, y, NEG_SLOPE * y)                 # LeakyReLU(0.2)
    # Dropout2d(0.25): identity in eval mode.
    return y * scale + shift                                  # eval-mode BN folded


def _scatter_padded(pad_ref, y, ho_n, wo_n):
    """Write (ho_n*wo_n, c) output rows into the next layer's padded scratch."""
    pad_ref[...] = jnp.zeros(pad_ref.shape, pad_ref.dtype)    # zero border (tiny)
    wp = wo_n + 2
    for ho in range(ho_n):
        pad_ref[pl.ds((ho + 1) * wp + 1, wo_n), :] = y[ho * wo_n:(ho + 1) * wo_n, :]


def _make_kernel(c0, h0, w0):
    chans = [c0, 16, 32, 64, 128]
    ds = h0 // 16

    def kernel(img_ref, w0_ref, w1_ref, w2_ref, w3_ref, ep_ref, o_ref,
               pad1_ref, pad2_ref, pad3_ref):
        w_refs = (w0_ref, w1_ref, w2_ref, w3_ref)
        pad_refs = (pad1_ref, pad2_ref, pad3_ref)
        inp = img_ref                                          # padded layer-0 rows
        y = None
        for l in range(4):
            hin, win = h0 >> l, w0 >> l
            y = _conv_block(inp, w_refs[l], ep_ref, l, hin, win,
                            chans[l], chans[l + 1])
            if l < 3:
                _scatter_padded(pad_refs[l], y, hin // 2, win // 2)
                inp = pad_refs[l]
        # adv_layer: Linear(128*ds*ds -> 1) + Sigmoid as a VPU/XLU reduction.
        lw = ep_ref[pl.ds(13, ds * ds), :]                     # (ds*ds, 128)
        z = y * lw                                             # y: (ds*ds, 128) f32
        logit = jnp.sum(z, axis=1, keepdims=True)              # lane reduce
        logit = jnp.sum(logit, axis=0, keepdims=True)          # (1, 1)
        logit = logit + ep_ref[pl.ds(12, 1), pl.ds(0, 1)]      # linear bias
        o_ref[...] = jax.nn.sigmoid(logit)

    return kernel


def discriminator_forward(img, ops):
    """img: (N, C, H, W) float32 -> validity (N, 1) via one fused Pallas kernel."""
    n, c, h, w = img.shape
    ds = h // 16
    hp, wp = h + 2, w + 2
    # Channels-last rows with a +1 spatial zero pad; C is NOT padded to 128.
    x = jnp.transpose(img, (0, 2, 3, 1))
    x = jnp.pad(x, ((0, 0), (1, 1), (1, 1), (0, 0)))
    rows = x.reshape(n, hp * wp, c).astype(jnp.float32)

    w_mats = ops["w_mats"]
    ep = ops["ep"]
    chans = [c, 16, 32, 64, 128]

    flops = 0
    for l in range(4):
        m = (h >> (l + 1)) * (w >> (l + 1))
        flops += 2 * m * 9 * chans[l] * chans[l + 1]
    flops = n * (flops + 2 * 128 * ds * ds)
    bytes_accessed = (rows.size * 4 + sum(wm.size * 2 for wm in w_mats)
                      + ep.size * 4 + n * 4)

    scratch_shapes = [
        pltpu.VMEM((((h >> l) + 2) * ((w >> l) + 2), chans[l]), jnp.float32)
        for l in range(1, 4)
    ]

    out = pl.pallas_call(
        _make_kernel(c, h, w),
        out_shape=jax.ShapeDtypeStruct((n, 1, 1), jnp.float32),
        grid=(n,),
        in_specs=(
            [pl.BlockSpec((None, hp * wp, c), lambda i: (i, 0, 0))]
            + [pl.BlockSpec(wm.shape, lambda i: (0, 0)) for wm in w_mats]
            + [pl.BlockSpec(ep.shape, lambda i: (0, 0))]
        ),
        out_specs=pl.BlockSpec((None, 1, 1), lambda i: (i, 0, 0)),
        scratch_shapes=scratch_shapes,
        compiler_params=pltpu.CompilerParams(
            dimension_semantics=("parallel",),
            vmem_limit_bytes=32 * 1024 * 1024),
        cost_estimate=pl.CostEstimate(flops=int(flops), transcendentals=n,
                                      bytes_accessed=int(bytes_accessed)),
    )(rows, *w_mats, ep)
    return out.reshape(n, 1)


# --------------------------- host-side preparation -------------------------- #

def init_discriminator_params(key, img_shape):
    """Deterministic synthetic params matching the PyTorch module's shapes."""
    c0, h, w = img_shape
    assert h == w and h % 16 == 0
    chans = [c0, 16, 32, 64, 128]
    convs = []
    for i in range(4):
        key, kw_, kb_, kg_, kbe_ = jax.random.split(key, 5)
        cin, cout = chans[i], chans[i + 1]
        wgt = 0.1 * jax.random.normal(kw_, (cout, cin, 3, 3), jnp.float32)  # torch (O,I,KH,KW)
        b = 0.1 * jax.random.normal(kb_, (cout,), jnp.float32)
        if i == 0:                               # bn=False -> identity scale/shift
            scale = jnp.ones((cout,), jnp.float32)
            shift = jnp.zeros((cout,), jnp.float32)
        else:
            gamma = 1.0 + 0.1 * jax.random.normal(kg_, (cout,), jnp.float32)
            beta = 0.1 * jax.random.normal(kbe_, (cout,), jnp.float32)
            scale = gamma / jnp.sqrt(1.0 + BN_EPS)   # eval BN: mean=0, var=1, eps=0.8
            shift = beta
        convs.append(dict(w=wgt, b=b, scale=scale, shift=shift))
    ds = h // 16
    in_feat = 128 * ds * ds
    key, kw_, kb_ = jax.random.split(key, 3)
    lin_w = 0.1 * jax.random.normal(kw_, (1, in_feat), jnp.float32)          # torch (out,in)
    lin_b = 0.1 * jax.random.normal(kb_, (1,), jnp.float32)
    return dict(convs=convs, lin_w=lin_w, lin_b=lin_b)


def prepare_kernel_operands(params, img_shape):
    """Pack fused-tap conv weights and epilogue params (batch-independent)."""
    c0, h, w = img_shape
    chans = [c0, 16, 32, 64, 128]
    ds = h // 16

    w_mats = []
    ep = np.zeros((13 + ds * ds, 128), np.float32)
    for l in range(4):
        p = params["convs"][l]
        cin, cout = chans[l], chans[l + 1]
        wnp = np.asarray(p["w"], np.float32)                      # (cout, cin, 3, 3)
        # fused-K layout: K index = (kh*3 + kw)*cin + c  -> (9*cin, cout)
        wmat = np.transpose(wnp, (2, 3, 1, 0)).reshape(9 * cin, cout)
        w_mats.append(jnp.asarray(wmat, jnp.bfloat16))
        ep[3 * l + 0, :cout] = np.asarray(p["b"], np.float32)
        ep[3 * l + 1, :cout] = np.asarray(p["scale"], np.float32)
        ep[3 * l + 2, :cout] = np.asarray(p["shift"], np.float32)
    ep[12, :] = float(np.asarray(params["lin_b"], np.float32)[0])
    lw = np.asarray(params["lin_w"], np.float32).reshape(128, ds, ds)   # torch (c, h, w)
    ep[13:13 + ds * ds, :] = np.transpose(lw, (1, 2, 0)).reshape(ds * ds, 128)

    return dict(w_mats=w_mats, ep=jnp.asarray(ep, jnp.float32))


# ----------------------------- pure-JAX reference --------------------------- #

def _reference_forward(img, params):
    x = img.astype(jnp.float32)
    for p in params["convs"]:
        x = lax.conv_general_dilated(
            x, p["w"], window_strides=(2, 2), padding=((1, 1), (1, 1)),
            dimension_numbers=("NCHW", "OIHW", "NCHW"))
        x = x + p["b"][None, :, None, None]
        x = jnp.where(x >= 0.0, x, NEG_SLOPE * x)
        x = x * p["scale"][None, :, None, None] + p["shift"][None, :, None, None]
    flat = x.reshape(x.shape[0], -1)
    return jax.nn.sigmoid(flat @ params["lin_w"].T + params["lin_b"])


# ---------------------------------- main ------------------------------------ #

if __name__ == "__main__":
    key = jax.random.PRNGKey(0)
    k_img, k_par = jax.random.split(key)

    img_shape = (4, 16, 16)          # (C, H, W); H divisible by 2**4
    batch = 2
    img = jax.random.normal(k_img, (batch,) + img_shape, jnp.float32)

    params = init_discriminator_params(k_par, img_shape)
    ops = prepare_kernel_operands(params, img_shape)

    validity = jax.block_until_ready(discriminator_forward(img, ops))
    reference = jax.block_until_ready(_reference_forward(img, params))

    assert validity.shape == (batch, 1)
    assert bool(jnp.all(jnp.isfinite(validity)))
    assert bool(jnp.all((validity >= 0.0) & (validity <= 1.0)))
    assert bool(jnp.allclose(validity, reference, atol=2e-2, rtol=2e-2)), (validity, reference)
    print("KERNEL_OK")
</pallas_src>

<mosaic_0001>
module attributes {stable_mosaic.version = 11 : i64} {
  func.func @kernel(%arg0: i32, %arg1: memref<1x324x4xf32, #tpu.memory_space<vmem>>, %arg2: memref<36x16xbf16, #tpu.memory_space<vmem>>, %arg3: memref<144x32xbf16, #tpu.memory_space<vmem>>, %arg4: memref<288x64xbf16, #tpu.memory_space<vmem>>, %arg5: memref<576x128xbf16, #tpu.memory_space<vmem>>, %arg6: memref<14x128xf32, #tpu.memory_space<vmem>>, %arg7: memref<1x1x1xf32, #tpu.memory_space<vmem>>, %arg8: memref<100x16xf32, #tpu.memory_space<vmem>>, %arg9: memref<36x32xf32, #tpu.memory_space<vmem>>, %arg10: memref<16x64xf32, #tpu.memory_space<vmem>>) attributes {dimension_semantics = [#tpu.dimension_semantics<parallel>], iteration_bounds = array<i64: 2>, scalar_prefetch = 0 : i64, scratch_operands = 3 : i64, tpu.core_type = #tpu.core_type<tc>, window_params = [{transform_indices = @transform_0, window_bounds = array<i64: 1, 324, 4>}, {pipeline_mode = #tpu.pipeline_mode<synchronous>, transform_indices = @transform_1, window_bounds = array<i64: 36, 16>}, {pipeline_mode = #tpu.pipeline_mode<synchronous>, transform_indices = @transform_2, window_bounds = array<i64: 144, 32>}, {pipeline_mode = #tpu.pipeline_mode<synchronous>, transform_indices = @transform_3, window_bounds = array<i64: 288, 64>}, {pipeline_mode = #tpu.pipeline_mode<synchronous>, transform_indices = @transform_4, window_bounds = array<i64: 576, 128>}, {pipeline_mode = #tpu.pipeline_mode<synchronous>, transform_indices = @transform_5, window_bounds = array<i64: 14, 128>}, {transform_indices = @transform_6, window_bounds = array<i64: 1, 1, 1>}]} {
    %c0 = arith.constant 0 : index
    %c0_0 = arith.constant 0 : index
    %c0_1 = arith.constant 0 : index
    %0 = tpu.strided_load %arg1[%c0, %c0_0, %c0_1] {strides = array<i32: 1, 2, 1>} : memref<1x324x4xf32, #tpu.memory_space<vmem>>, vector<1x8x4xf32>
    %1 = vector.shape_cast %0 : vector<1x8x4xf32> to vector<8x4xf32>
    %c0_2 = arith.constant 0 : index
    %c36 = arith.constant 36 : index
    %c0_3 = arith.constant 0 : index
    %2 = tpu.strided_load %arg1[%c0_2, %c36, %c0_3] {strides = array<i32: 1, 2, 1>} : memref<1x324x4xf32, #tpu.memory_space<vmem>>, vector<1x8x4xf32>
    %3 = vector.shape_cast %2 : vector<1x8x4xf32> to vector<8x4xf32>
    %c0_4 = arith.constant 0 : index
    %c72 = arith.constant 72 : index
    %c0_5 = arith.constant 0 : index
    %4 = tpu.strided_load %arg1[%c0_4, %c72, %c0_5] {strides = array<i32: 1, 2, 1>} : memref<1x324x4xf32, #tpu.memory_space<vmem>>, vector<1x8x4xf32>
    %5 = vector.shape_cast %4 : vector<1x8x4xf32> to vector<8x4xf32>
    %c0_6 = arith.constant 0 : index
    %c108 = arith.constant 108 : index
    %c0_7 = arith.constant 0 : index
    %6 = tpu.strided_load %arg1[%c0_6, %c108, %c0_7] {strides = array<i32: 1, 2, 1>} : memref<1x324x4xf32, #tpu.memory_space<vmem>>, vector<1x8x4xf32>
    %7 = vector.shape_cast %6 : vector<1x8x4xf32> to vector<8x4xf32>
    %c0_8 = arith.constant 0 : index
    %c144 = arith.constant 144 : index
    %c0_9 = arith.constant 0 : index
    %8 = tpu.strided_load %arg1[%c0_8, %c144, %c0_9] {strides = array<i32: 1, 2, 1>} : memref<1x324x4xf32, #tpu.memory_space<vmem>>, vector<1x8x4xf32>
    %9 = vector.shape_cast %8 : vector<1x8x4xf32> to vector<8x4xf32>
    %c0_10 = arith.constant 0 : index
    %c180 = arith.constant 180 : index
    %c0_11 = arith.constant 0 : index
    %10 = tpu.strided_load %arg1[%c0_10, %c180, %c0_11] {strides = array<i32: 1, 2, 1>} : memref<1x324x4xf32, #tpu.memory_space<vmem>>, vector<1x8x4xf32>
    %11 = vector.shape_cast %10 : vector<1x8x4xf32> to vector<8x4xf32>
    %c0_12 = arith.constant 0 : index
    %c216 = arith.constant 216 : index
    %c0_13 = arith.constant 0 : index
    %12 = tpu.strided_load %arg1[%c0_12, %c216, %c0_13] {strides = array<i32: 1, 2, 1>} : memref<1x324x4xf32, #tpu.memory_space<vmem>>, vector<1x8x4xf32>
    %13 = vector.shape_cast %12 : vector<1x8x4xf32> to vector<8x4xf32>
    %c0_14 = arith.constant 0 : index
    %c252 = arith.constant 252 : index
    %c0_15 = arith.constant 0 : index
    %14 = tpu.strided_load %arg1[%c0_14, %c252, %c0_15] {strides = array<i32: 1, 2, 1>} : memref<1x324x4xf32, #tpu.memory_space<vmem>>, vector<1x8x4xf32>
    %15 = vector.shape_cast %14 : vector<1x8x4xf32> to vector<8x4xf32>
    %16 = tpu.concatenate %1, %3, %5, %7, %9, %11, %13, %15 in 0 : vector<8x4xf32>, vector<8x4xf32>, vector<8x4xf32>, vector<8x4xf32>, vector<8x4xf32>, vector<8x4xf32>, vector<8x4xf32>, vector<8x4xf32> -> vector<64x4xf32>
    %c0_16 = arith.constant 0 : index
    %c1 = arith.constant 1 : index
    %c0_17 = arith.constant 0 : index
    %17 = tpu.strided_load %arg1[%c0_16, %c1, %c0_17] {strides = array<i32: 1, 2, 1>} : memref<1x324x4xf32, #tpu.memory_space<vmem>>, vector<1x8x4xf32>
    %18 = vector.shape_cast %17 : vector<1x8x4xf32> to vector<8x4xf32>
    %c0_18 = arith.constant 0 : index
    %c37 = arith.constant 37 : index
    %c0_19 = arith.constant 0 : index
    %19 = tpu.strided_load %arg1[%c0_18, %c37, %c0_19] {strides = array<i32: 1, 2, 1>} : memref<1x324x4xf32, #tpu.memory_space<vmem>>, vector<1x8x4xf32>
    %20 = vector.shape_cast %19 : vector<1x8x4xf32> to vector<8x4xf32>
    %c0_20 = arith.constant 0 : index
    %c73 = arith.constant 73 : index
    %c0_21 = arith.constant 0 : index
    %21 = tpu.strided_load %arg1[%c0_20, %c73, %c0_21] {strides = array<i32: 1, 2, 1>} : memref<1x324x4xf32, #tpu.memory_space<vmem>>, vector<1x8x4xf32>
    %22 = vector.shape_cast %21 : vector<1x8x4xf32> to vector<8x4xf32>
    %c0_22 = arith.constant 0 : index
    %c109 = arith.constant 109 : index
    %c0_23 = arith.constant 0 : index
    %23 = tpu.strided_load %arg1[%c0_22, %c109, %c0_23] {strides = array<i32: 1, 2, 1>} : memref<1x324x4xf32, #tpu.memory_space<vmem>>, vector<1x8x4xf32>
    %24 = vector.shape_cast %23 : vector<1x8x4xf32> to vector<8x4xf32>
    %c0_24 = arith.constant 0 : index
    %c145 = arith.constant 145 : index
    %c0_25 = arith.constant 0 : index
    %25 = tpu.strided_load %arg1[%c0_24, %c145, %c0_25] {strides = array<i32: 1, 2, 1>} : memref<1x324x4xf32, #tpu.memory_space<vmem>>, vector<1x8x4xf32>
    %26 = vector.shape_cast %25 : vector<1x8x4xf32> to vector<8x4xf32>
    %c0_26 = arith.constant 0 : index
    %c181 = arith.constant 181 : index
    %c0_27 = arith.constant 0 : index
    %27 = tpu.strided_load %arg1[%c0_26, %c181, %c0_27] {strides = array<i32: 1, 2, 1>} : memref<1x324x4xf32, #tpu.memory_space<vmem>>, vector<1x8x4xf32>
    %28 = vector.shape_cast %27 : vector<1x8x4xf32> to vector<8x4xf32>
    %c0_28 = arith.constant 0 : index
    %c217 = arith.constant 217 : index
    %c0_29 = arith.constant 0 : index
    %29 = tpu.strided_load %arg1[%c0_28, %c217, %c0_29] {strides = array<i32: 1, 2, 1>} : memref<1x324x4xf32, #tpu.memory_space<vmem>>, vector<1x8x4xf32>
    %30 = vector.shape_cast %29 : vector<1x8x4xf32> to vector<8x4xf32>
    %c0_30 = arith.constant 0 : index
    %c253 = arith.constant 253 : index
    %c0_31 = arith.constant 0 : index
    %31 = tpu.strided_load %arg1[%c0_30, %c253, %c0_31] {strides = array<i32: 1, 2, 1>} : memref<1x324x4xf32, #tpu.memory_space<vmem>>, vector<1x8x4xf32>
    %32 = vector.shape_cast %31 : vector<1x8x4xf32> to vector<8x4xf32>
    %33 = tpu.concatenate %18, %20, %22, %24, %26, %28, %30, %32 in 0 : vector<8x4xf32>, vector<8x4xf32>, vector<8x4xf32>, vector<8x4xf32>, vector<8x4xf32>, vector<8x4xf32>, vector<8x4xf32>, vector<8x4xf32> -> vector<64x4xf32>
    %c0_32 = arith.constant 0 : index
    %c2 = arith.constant 2 : index
    %c0_33 = arith.constant 0 : index
    %34 = tpu.strided_load %arg1[%c0_32, %c2, %c0_33] {strides = array<i32: 1, 2, 1>} : memref<1x324x4xf32, #tpu.memory_space<vmem>>, vector<1x8x4xf32>
    %35 = vector.shape_cast %34 : vector<1x8x4xf32> to vector<8x4xf32>
    %c0_34 = arith.constant 0 : index
    %c38 = arith.constant 38 : index
    %c0_35 = arith.constant 0 : index
    %36 = tpu.strided_load %arg1[%c0_34, %c38, %c0_35] {strides = array<i32: 1, 2, 1>} : memref<1x324x4xf32, #tpu.memory_space<vmem>>, vector<1x8x4xf32>
    %37 = vector.shape_cast %36 : vector<1x8x4xf32> to vector<8x4xf32>
    %c0_36 = arith.constant 0 : index
    %c74 = arith.constant 74 : index
    %c0_37 = arith.constant 0 : index
    %38 = tpu.strided_load %arg1[%c0_36, %c74, %c0_37] {strides = array<i32: 1, 2, 1>} : memref<1x324x4xf32, #tpu.memory_space<vmem>>, vector<1x8x4xf32>
    %39 = vector.shape_cast %38 : vector<1x8x4xf32> to vector<8x4xf32>
    %c0_38 = arith.constant 0 : index
    %c110 = arith.constant 110 : index
    %c0_39 = arith.constant 0 : index
    %40 = tpu.strided_load %arg1[%c0_38, %c110, %c0_39] {strides = array<i32: 1, 2, 1>} : memref<1x324x4xf32, #tpu.memory_space<vmem>>, vector<1x8x4xf32>
    %41 = vector.shape_cast %40 : vector<1x8x4xf32> to vector<8x4xf32>
    %c0_40 = arith.constant 0 : index
    %c146 = arith.constant 146 : index
    %c0_41 = arith.constant 0 : index
    %42 = tpu.strided_load %arg1[%c0_40, %c146, %c0_41] {strides = array<i32: 1, 2, 1>} : memref<1x324x4xf32, #tpu.memory_space<vmem>>, vector<1x8x4xf32>
    %43 = vector.shape_cast %42 : vector<1x8x4xf32> to vector<8x4xf32>
    %c0_42 = arith.constant 0 : index
    %c182 = arith.constant 182 : index
    %c0_43 = arith.constant 0 : index
    %44 = tpu.strided_load %arg1[%c0_42, %c182, %c0_43] {strides = array<i32: 1, 2, 1>} : memref<1x324x4xf32, #tpu.memory_space<vmem>>, vector<1x8x4xf32>
    %45 = vector.shape_cast %44 : vector<1x8x4xf32> to vector<8x4xf32>
    %c0_44 = arith.constant 0 : index
    %c218 = arith.constant 218 : index
    %c0_45 = arith.constant 0 : index
    %46 = tpu.strided_load %arg1[%c0_44, %c218, %c0_45] {strides = array<i32: 1, 2, 1>} : memref<1x324x4xf32, #tpu.memory_space<vmem>>, vector<1x8x4xf32>
    %47 = vector.shape_cast %46 : vector<1x8x4xf32> to vector<8x4xf32>
    %c0_46 = arith.constant 0 : index
    %c254 = arith.constant 254 : index
    %c0_47 = arith.constant 0 : index
    %48 = tpu.strided_load %arg1[%c0_46, %c254, %c0_47] {strides = array<i32: 1, 2, 1>} : memref<1x324x4xf32, #tpu.memory_space<vmem>>, vector<1x8x4xf32>
    %49 = vector.shape_cast %48 : vector<1x8x4xf32> to vector<8x4xf32>
    %50 = tpu.concatenate %35, %37, %39, %41, %43, %45, %47, %49 in 0 : vector<8x4xf32>, vector<8x4xf32>, vector<8x4xf32>, vector<8x4xf32>, vector<8x4xf32>, vector<8x4xf32>, vector<8x4xf32>, vector<8x4xf32> -> vector<64x4xf32>
    %c0_48 = arith.constant 0 : index
    %c18 = arith.constant 18 : index
    %c0_49 = arith.constant 0 : index
    %51 = tpu.strided_load %arg1[%c0_48, %c18, %c0_49] {strides = array<i32: 1, 2, 1>} : memref<1x324x4xf32, #tpu.memory_space<vmem>>, vector<1x8x4xf32>
    %52 = vector.shape_cast %51 : vector<1x8x4xf32> to vector<8x4xf32>
    %c0_50 = arith.constant 0 : index
    %c54 = arith.constant 54 : index
    %c0_51 = arith.constant 0 : index
    %53 = tpu.strided_load %arg1[%c0_50, %c54, %c0_51] {strides = array<i32: 1, 2, 1>} : memref<1x324x4xf32, #tpu.memory_space<vmem>>, vector<1x8x4xf32>
    %54 = vector.shape_cast %53 : vector<1x8x4xf32> to vector<8x4xf32>
    %c0_52 = arith.constant 0 : index
    %c90 = arith.constant 90 : index
    %c0_53 = arith.constant 0 : index
    %55 = tpu.strided_load %arg1[%c0_52, %c90, %c0_53] {strides = array<i32: 1, 2, 1>} : memref<1x324x4xf32, #tpu.memory_space<vmem>>, vector<1x8x4xf32>
    %56 = vector.shape_cast %55 : vector<1x8x4xf32> to vector<8x4xf32>
    %c0_54 = arith.constant 0 : index
    %c126 = arith.constant 126 : index
    %c0_55 = arith.constant 0 : index
    %57 = tpu.strided_load %arg1[%c0_54, %c126, %c0_55] {strides = array<i32: 1, 2, 1>} : memref<1x324x4xf32, #tpu.memory_space<vmem>>, vector<1x8x4xf32>
    %58 = vector.shape_cast %57 : vector<1x8x4xf32> to vector<8x4xf32>
    %c0_56 = arith.constant 0 : index
    %c162 = arith.constant 162 : index
    %c0_57 = arith.constant 0 : index
    %59 = tpu.strided_load %arg1[%c0_56, %c162, %c0_57] {strides = array<i32: 1, 2, 1>} : memref<1x324x4xf32, #tpu.memory_space<vmem>>, vector<1x8x4xf32>
    %60 = vector.shape_cast %59 : vector<1x8x4xf32> to vector<8x4xf32>
    %c0_58 = arith.constant 0 : index
    %c198 = arith.constant 198 : index
    %c0_59 = arith.constant 0 : index
    %61 = tpu.strided_load %arg1[%c0_58, %c198, %c0_59] {strides = array<i32: 1, 2, 1>} : memref<1x324x4xf32, #tpu.memory_space<vmem>>, vector<1x8x4xf32>
    %62 = vector.shape_cast %61 : vector<1x8x4xf32> to vector<8x4xf32>
    %c0_60 = arith.constant 0 : index
    %c234 = arith.constant 234 : index
    %c0_61 = arith.constant 0 : index
    %63 = tpu.strided_load %arg1[%c0_60, %c234, %c0_61] {strides = array<i32: 1, 2, 1>} : memref<1x324x4xf32, #tpu.memory_space<vmem>>, vector<1x8x4xf32>
    %64 = vector.shape_cast %63 : vector<1x8x4xf32> to vector<8x4xf32>
    %c0_62 = arith.constant 0 : index
    %c270 = arith.constant 270 : index
    %c0_63 = arith.constant 0 : index
    %65 = tpu.strided_load %arg1[%c0_62, %c270, %c0_63] {strides = array<i32: 1, 2, 1>} : memref<1x324x4xf32, #tpu.memory_space<vmem>>, vector<1x8x4xf32>
    %66 = vector.shape_cast %65 : vector<1x8x4xf32> to vector<8x4xf32>
    %67 = tpu.concatenate %52, %54, %56, %58, %60, %62, %64, %66 in 0 : vector<8x4xf32>, vector<8x4xf32>, vector<8x4xf32>, vector<8x4xf32>, vector<8x4xf32>, vector<8x4xf32>, vector<8x4xf32>, vector<8x4xf32> -> vector<64x4xf32>
    %c0_64 = arith.constant 0 : index
    %c19 = arith.constant 19 : index
    %c0_65 = arith.constant 0 : index
    %68 = tpu.strided_load %arg1[%c0_64, %c19, %c0_65] {strides = array<i32: 1, 2, 1>} : memref<1x324x4xf32, #tpu.memory_space<vmem>>, vector<1x8x4xf32>
    %69 = vector.shape_cast %68 : vector<1x8x4xf32> to vector<8x4xf32>
    %c0_66 = arith.constant 0 : index
    %c55 = arith.constant 55 : index
    %c0_67 = arith.constant 0 : index
    %70 = tpu.strided_load %arg1[%c0_66, %c55, %c0_67] {strides = array<i32: 1, 2, 1>} : memref<1x324x4xf32, #tpu.memory_space<vmem>>, vector<1x8x4xf32>
    %71 = vector.shape_cast %70 : vector<1x8x4xf32> to vector<8x4xf32>
    %c0_68 = arith.constant 0 : index
    %c91 = arith.constant 91 : index
    %c0_69 = arith.constant 0 : index
    %72 = tpu.strided_load %arg1[%c0_68, %c91, %c0_69] {strides = array<i32: 1, 2, 1>} : memref<1x324x4xf32, #tpu.memory_space<vmem>>, vector<1x8x4xf32>
    %73 = vector.shape_cast %72 : vector<1x8x4xf32> to vector<8x4xf32>
    %c0_70 = arith.constant 0 : index
    %c127 = arith.constant 127 : index
    %c0_71 = arith.constant 0 : index
    %74 = tpu.strided_load %arg1[%c0_70, %c127, %c0_71] {strides = array<i32: 1, 2, 1>} : memref<1x324x4xf32, #tpu.memory_space<vmem>>, vector<1x8x4xf32>
    %75 = vector.shape_cast %74 : vector<1x8x4xf32> to vector<8x4xf32>
    %c0_72 = arith.constant 0 : index
    %c163 = arith.constant 163 : index
    %c0_73 = arith.constant 0 : index
    %76 = tpu.strided_load %arg1[%c0_72, %c163, %c0_73] {strides = array<i32: 1, 2, 1>} : memref<1x324x4xf32, #tpu.memory_space<vmem>>, vector<1x8x4xf32>
    %77 = vector.shape_cast %76 : vector<1x8x4xf32> to vector<8x4xf32>
    %c0_74 = arith.constant 0 : index
    %c199 = arith.constant 199 : index
    %c0_75 = arith.constant 0 : index
    %78 = tpu.strided_load %arg1[%c0_74, %c199, %c0_75] {strides = array<i32: 1, 2, 1>} : memref<1x324x4xf32, #tpu.memory_space<vmem>>, vector<1x8x4xf32>
    %79 = vector.shape_cast %78 : vector<1x8x4xf32> to vector<8x4xf32>
    %c0_76 = arith.constant 0 : index
    %c235 = arith.constant 235 : index
    %c0_77 = arith.constant 0 : index
    %80 = tpu.strided_load %arg1[%c0_76, %c235, %c0_77] {strides = array<i32: 1, 2, 1>} : memref<1x324x4xf32, #tpu.memory_space<vmem>>, vector<1x8x4xf32>
    %81 = vector.shape_cast %80 : vector<1x8x4xf32> to vector<8x4xf32>
    %c0_78 = arith.constant 0 : index
    %c271 = arith.constant 271 : index
    %c0_79 = arith.constant 0 : index
    %82 = tpu.strided_load %arg1[%c0_78, %c271, %c0_79] {strides = array<i32: 1, 2, 1>} : memref<1x324x4xf32, #tpu.memory_space<vmem>>, vector<1x8x4xf32>
    %83 = vector.shape_cast %82 : vector<1x8x4xf32> to vector<8x4xf32>
    %84 = tpu.concatenate %69, %71, %73, %75, %77, %79, %81, %83 in 0 : vector<8x4xf32>, vector<8x4xf32>, vector<8x4xf32>, vector<8x4xf32>, vector<8x4xf32>, vector<8x4xf32>, vector<8x4xf32>, vector<8x4xf32> -> vector<64x4xf32>
    %c0_80 = arith.constant 0 : index
    %c20 = arith.constant 20 : index
    %c0_81 = arith.constant 0 : index
    %85 = tpu.strided_load %arg1[%c0_80, %c20, %c0_81] {strides = array<i32: 1, 2, 1>} : memref<1x324x4xf32, #tpu.memory_space<vmem>>, vector<1x8x4xf32>
    %86 = vector.shape_cast %85 : vector<1x8x4xf32> to vector<8x4xf32>
    %c0_82 = arith.constant 0 : index
    %c56 = arith.constant 56 : index
    %c0_83 = arith.constant 0 : index
    %87 = tpu.strided_load %arg1[%c0_82, %c56, %c0_83] {strides = array<i32: 1, 2, 1>} : memref<1x324x4xf32, #tpu.memory_space<vmem>>, vector<1x8x4xf32>
    %88 = vector.shape_cast %87 : vector<1x8x4xf32> to vector<8x4xf32>
    %c0_84 = arith.constant 0 : index
    %c92 = arith.constant 92 : index
    %c0_85 = arith.constant 0 : index
    %89 = tpu.strided_load %arg1[%c0_84, %c92, %c0_85] {strides = array<i32: 1, 2, 1>} : memref<1x324x4xf32, #tpu.memory_space<vmem>>, vector<1x8x4xf32>
    %90 = vector.shape_cast %89 : vector<1x8x4xf32> to vector<8x4xf32>
    %c0_86 = arith.constant 0 : index
    %c128 = arith.constant 128 : index
    %c0_87 = arith.constant 0 : index
    %91 = tpu.strided_load %arg1[%c0_86, %c128, %c0_87] {strides = array<i32: 1, 2, 1>} : memref<1x324x4xf32, #tpu.memory_space<vmem>>, vector<1x8x4xf32>
    %92 = vector.shape_cast %91 : vector<1x8x4xf32> to vector<8x4xf32>
    %c0_88 = arith.constant 0 : index
    %c164 = arith.constant 164 : index
    %c0_89 = arith.constant 0 : index
    %93 = tpu.strided_load %arg1[%c0_88, %c164, %c0_89] {strides = array<i32: 1, 2, 1>} : memref<1x324x4xf32, #tpu.memory_space<vmem>>, vector<1x8x4xf32>
    %94 = vector.shape_cast %93 : vector<1x8x4xf32> to vector<8x4xf32>
    %c0_90 = arith.constant 0 : index
    %c200 = arith.constant 200 : index
    %c0_91 = arith.constant 0 : index
    %95 = tpu.strided_load %arg1[%c0_90, %c200, %c0_91] {strides = array<i32: 1, 2, 1>} : memref<1x324x4xf32, #tpu.memory_space<vmem>>, vector<1x8x4xf32>
    %96 = vector.shape_cast %95 : vector<1x8x4xf32> to vector<8x4xf32>
    %c0_92 = arith.constant 0 : index
    %c236 = arith.constant 236 : index
    %c0_93 = arith.constant 0 : index
    %97 = tpu.strided_load %arg1[%c0_92, %c236, %c0_93] {strides = array<i32: 1, 2, 1>} : memref<1x324x4xf32, #tpu.memory_space<vmem>>, vector<1x8x4xf32>
    %98 = vector.shape_cast %97 : vector<1x8x4xf32> to vector<8x4xf32>
    %c0_94 = arith.constant 0 : index
    %c272 = arith.constant 272 : index
    %c0_95 = arith.constant 0 : index
    %99 = tpu.strided_load %arg1[%c0_94, %c272, %c0_95] {strides = array<i32: 1, 2, 1>} : memref<1x324x4xf32, #tpu.memory_space<vmem>>, vector<1x8x4xf32>
    %100 = vector.shape_cast %99 : vector<1x8x4xf32> to vector<8x4xf32>
    %101 = tpu.concatenate %86, %88, %90, %92, %94, %96, %98, %100 in 0 : vector<8x4xf32>, vector<8x4xf32>, vector<8x4xf32>, vector<8x4xf32>, vector<8x4xf32>, vector<8x4xf32>, vector<8x4xf32>, vector<8x4xf32> -> vector<64x4xf32>
    %c0_96 = arith.constant 0 : index
    %c36_97 = arith.constant 36 : index
    %c0_98 = arith.constant 0 : index
    %102 = tpu.strided_load %arg1[%c0_96, %c36_97, %c0_98] {strides = array<i32: 1, 2, 1>} : memref<1x324x4xf32, #tpu.memory_space<vmem>>, vector<1x8x4xf32>
    %103 = vector.shape_cast %102 : vector<1x8x4xf32> to vector<8x4xf32>
    %c0_99 = arith.constant 0 : index
    %c72_100 = arith.constant 72 : index
    %c0_101 = arith.constant 0 : index
    %104 = tpu.strided_load %arg1[%c0_99, %c72_100, %c0_101] {strides = array<i32: 1, 2, 1>} : memref<1x324x4xf32, #tpu.memory_space<vmem>>, vector<1x8x4xf32>
    %105 = vector.shape_cast %104 : vector<1x8x4xf32> to vector<8x4xf32>
    %c0_102 = arith.constant 0 : index
    %c108_103 = arith.constant 108 : index
    %c0_104 = arith.constant 0 : index
    %106 = tpu.strided_load %arg1[%c0_102, %c108_103, %c0_104] {strides = array<i32: 1, 2, 1>} : memref<1x324x4xf32, #tpu.memory_space<vmem>>, vector<1x8x4xf32>
    %107 = vector.shape_cast %106 : vector<1x8x4xf32> to vector<8x4xf32>
    %c0_105 = arith.constant 0 : index
    %c144_106 = arith.constant 144 : index
    %c0_107 = arith.constant 0 : index
    %108 = tpu.strided_load %arg1[%c0_105, %c144_106, %c0_107] {strides = array<i32: 1, 2, 1>} : memref<1x324x4xf32, #tpu.memory_space<vmem>>, vector<1x8x4xf32>
    %109 = vector.shape_cast %108 : vector<1x8x4xf32> to vector<8x4xf32>
    %c0_108 = arith.constant 0 : index
    %c180_109 = arith.constant 180 : index
    %c0_110 = arith.constant 0 : index
    %110 = tpu.strided_load %arg1[%c0_108, %c180_109, %c0_110] {strides = array<i32: 1, 2, 1>} : memref<1x324x4xf32, #tpu.memory_space<vmem>>, vector<1x8x4xf32>
    %111 = vector.shape_cast %110 : vector<1x8x4xf32> to vector<8x4xf32>
    %c0_111 = arith.constant 0 : index
    %c216_112 = arith.constant 216 : index
    %c0_113 = arith.constant 0 : index
    %112 = tpu.strided_load %arg1[%c0_111, %c216_112, %c0_113] {strides = array<i32: 1, 2, 1>} : memref<1x324x4xf32, #tpu.memory_space<vmem>>, vector<1x8x4xf32>
    %113 = vector.shape_cast %112 : vector<1x8x4xf32> to vector<8x4xf32>
    %c0_114 = arith.constant 0 : index
    %c252_115 = arith.constant 252 : index
    %c0_116 = arith.constant 0 : index
    %114 = tpu.strided_load %arg1[%c0_114, %c252_115, %c0_116] {strides = array<i32: 1, 2, 1>} : memref<1x324x4xf32, #tpu.memory_space<vmem>>, vector<1x8x4xf32>
    %115 = vector.shape_cast %114 : vector<1x8x4xf32> to vector<8x4xf32>
    %c0_117 = arith.constant 0 : index
    %c288 = arith.constant 288 : index
    %c0_118 = arith.constant 0 : index
    %116 = tpu.strided_load %arg1[%c0_117, %c288, %c0_118] {strides = array<i32: 1, 2, 1>} : memref<1x324x4xf32, #tpu.memory_space<vmem>>, vector<1x8x4xf32>
    %117 = vector.shape_cast %116 : vector<1x8x4xf32> to vector<8x4xf32>
    %118 = tpu.concatenate %103, %105, %107, %109, %111, %113, %115, %117 in 0 : vector<8x4xf32>, vector<8x4xf32>, vector<8x4xf32>, vector<8x4xf32>, vector<8x4xf32>, vector<8x4xf32>, vector<8x4xf32>, vector<8x4xf32> -> vector<64x4xf32>
    %c0_119 = arith.constant 0 : index
    %c37_120 = arith.constant 37 : index
    %c0_121 = arith.constant 0 : index
    %119 = tpu.strided_load %arg1[%c0_119, %c37_120, %c0_121] {strides = array<i32: 1, 2, 1>} : memref<1x324x4xf32, #tpu.memory_space<vmem>>, vector<1x8x4xf32>
    %120 = vector.shape_cast %119 : vector<1x8x4xf32> to vector<8x4xf32>
    %c0_122 = arith.constant 0 : index
    %c73_123 = arith.constant 73 : index
    %c0_124 = arith.constant 0 : index
    %121 = tpu.strided_load %arg1[%c0_122, %c73_123, %c0_124] {strides = array<i32: 1, 2, 1>} : memref<1x324x4xf32, #tpu.memory_space<vmem>>, vector<1x8x4xf32>
    %122 = vector.shape_cast %121 : vector<1x8x4xf32> to vector<8x4xf32>
    %c0_125 = arith.constant 0 : index
    %c109_126 = arith.constant 109 : index
    %c0_127 = arith.constant 0 : index
    %123 = tpu.strided_load %arg1[%c0_125, %c109_126, %c0_127] {strides = array<i32: 1, 2, 1>} : memref<1x324x4xf32, #tpu.memory_space<vmem>>, vector<1x8x4xf32>
    %124 = vector.shape_cast %123 : vector<1x8x4xf32> to vector<8x4xf32>
    %c0_128 = arith.constant 0 : index
    %c145_129 = arith.constant 145 : index
    %c0_130 = arith.constant 0 : index
    %125 = tpu.strided_load %arg1[%c0_128, %c145_129, %c0_130] {strides = array<i32: 1, 2, 1>} : memref<1x324x4xf32, #tpu.memory_space<vmem>>, vector<1x8x4xf32>
    %126 = vector.shape_cast %125 : vector<1x8x4xf32> to vector<8x4xf32>
    %c0_131 = arith.constant 0 : index
    %c181_132 = arith.constant 181 : index
    %c0_133 = arith.constant 0 : index
    %127 = tpu.strided_load %arg1[%c0_131, %c181_132, %c0_133] {strides = array<i32: 1, 2, 1>} : memref<1x324x4xf32, #tpu.memory_space<vmem>>, vector<1x8x4xf32>
    %128 = vector.shape_cast %127 : vector<1x8x4xf32> to vector<8x4xf32>
    %c0_134 = arith.constant 0 : index
    %c217_135 = arith.constant 217 : index
    %c0_136 = arith.constant 0 : index
    %129 = tpu.strided_load %arg1[%c0_134, %c217_135, %c0_136] {strides = array<i32: 1, 2, 1>} : memref<1x324x4xf32, #tpu.memory_space<vmem>>, vector<1x8x4xf32>
    %130 = vector.shape_cast %129 : vector<1x8x4xf32> to vector<8x4xf32>
    %c0_137 = arith.constant 0 : index
    %c253_138 = arith.constant 253 : index
    %c0_139 = arith.constant 0 : index
    %131 = tpu.strided_load %arg1[%c0_137, %c253_138, %c0_139] {strides = array<i32: 1, 2, 1>} : memref<1x324x4xf32, #tpu.memory_space<vmem>>, vector<1x8x4xf32>
    %132 = vector.shape_cast %131 : vector<1x8x4xf32> to vector<8x4xf32>
    %c0_140 = arith.constant 0 : index
    %c289 = arith.constant 289 : index
    %c0_141 = arith.constant 0 : index
    %133 = tpu.strided_load %arg1[%c0_140, %c289, %c0_141] {strides = array<i32: 1, 2, 1>} : memref<1x324x4xf32, #tpu.memory_space<vmem>>, vector<1x8x4xf32>
    %134 = vector.shape_cast %133 : vector<1x8x4xf32> to vector<8x4xf32>
    %135 = tpu.concatenate %120, %122, %124, %126, %128, %130, %132, %134 in 0 : vector<8x4xf32>, vector<8x4xf32>, vector<8x4xf32>, vector<8x4xf32>, vector<8x4xf32>, vector<8x4xf32>, vector<8x4xf32>, vector<8x4xf32> -> vector<64x4xf32>
    %c0_142 = arith.constant 0 : index
    %c38_143 = arith.constant 38 : index
    %c0_144 = arith.constant 0 : index
    %136 = tpu.strided_load %arg1[%c0_142, %c38_143, %c0_144] {strides = array<i32: 1, 2, 1>} : memref<1x324x4xf32, #tpu.memory_space<vmem>>, vector<1x8x4xf32>
    %137 = vector.shape_cast %136 : vector<1x8x4xf32> to vector<8x4xf32>
    %c0_145 = arith.constant 0 : index
    %c74_146 = arith.constant 74 : index
    %c0_147 = arith.constant 0 : index
    %138 = tpu.strided_load %arg1[%c0_145, %c74_146, %c0_147] {strides = array<i32: 1, 2, 1>} : memref<1x324x4xf32, #tpu.memory_space<vmem>>, vector<1x8x4xf32>
    %139 = vector.shape_cast %138 : vector<1x8x4xf32> to vector<8x4xf32>
    %c0_148 = arith.constant 0 : index
    %c110_149 = arith.constant 110 : index
    %c0_150 = arith.constant 0 : index
    %140 = tpu.strided_load %arg1[%c0_148, %c110_149, %c0_150] {strides = array<i32: 1, 2, 1>} : memref<1x324x4xf32, #tpu.memory_space<vmem>>, vector<1x8x4xf32>
    %141 = vector.shape_cast %140 : vector<1x8x4xf32> to vector<8x4xf32>
    %c0_151 = arith.constant 0 : index
    %c146_152 = arith.constant 146 : index
    %c0_153 = arith.constant 0 : index
    %142 = tpu.strided_load %arg1[%c0_151, %c146_152, %c0_153] {strides = array<i32: 1, 2, 1>} : memref<1x324x4xf32, #tpu.memory_space<vmem>>, vector<1x8x4xf32>
    %143 = vector.shape_cast %142 : vector<1x8x4xf32> to vector<8x4xf32>
    %c0_154 = arith.constant 0 : index
    %c182_155 = arith.constant 182 : index
    %c0_156 = arith.constant 0 : index
    %144 = tpu.strided_load %arg1[%c0_154, %c182_155, %c0_156] {strides = array<i32: 1, 2, 1>} : memref<1x324x4xf32, #tpu.memory_space<vmem>>, vector<1x8x4xf32>
    %145 = vector.shape_cast %144 : vector<1x8x4xf32> to vector<8x4xf32>
    %c0_157 = arith.constant 0 : index
    %c218_158 = arith.constant 218 : index
    %c0_159 = arith.constant 0 : index
    %146 = tpu.strided_load %arg1[%c0_157, %c218_158, %c0_159] {strides = array<i32: 1, 2, 1>} : memref<1x324x4xf32, #tpu.memory_space<vmem>>, vector<1x8x4xf32>
    %147 = vector.shape_cast %146 : vector<1x8x4xf32> to vector<8x4xf32>
    %c0_160 = arith.constant 0 : index
    %c254_161 = arith.constant 254 : index
    %c0_162 = arith.constant 0 : index
    %148 = tpu.strided_load %arg1[%c0_160, %c254_161, %c0_162] {strides = array<i32: 1, 2, 1>} : memref<1x324x4xf32, #tpu.memory_space<vmem>>, vector<1x8x4xf32>
    %149 = vector.shape_cast %148 : vector<1x8x4xf32> to vector<8x4xf32>
    %c0_163 = arith.constant 0 : index
    %c290 = arith.constant 290 : index
    %c0_164 = arith.constant 0 : index
    %150 = tpu.strided_load %arg1[%c0_163, %c290, %c0_164] {strides = array<i32: 1, 2, 1>} : memref<1x324x4xf32, #tpu.memory_space<vmem>>, vector<1x8x4xf32>
    %151 = vector.shape_cast %150 : vector<1x8x4xf32> to vector<8x4xf32>
    %152 = tpu.concatenate %137, %139, %141, %143, %145, %147, %149, %151 in 0 : vector<8x4xf32>, vector<8x4xf32>, vector<8x4xf32>, vector<8x4xf32>, vector<8x4xf32>, vector<8x4xf32>, vector<8x4xf32>, vector<8x4xf32> -> vector<64x4xf32>
    %153 = tpu.concatenate %16, %33, %50, %67, %84, %101, %118, %135, %152 in 1 : vector<64x4xf32>, vector<64x4xf32>, vector<64x4xf32>, vector<64x4xf32>, vector<64x4xf32>, vector<64x4xf32>, vector<64x4xf32>, vector<64x4xf32>, vector<64x4xf32> -> vector<64x36xf32>
    %154 = arith.truncf %153 : vector<64x36xf32> to vector<64x36xbf16>
    %c0_165 = arith.constant 0 : index
    %c0_166 = arith.constant 0 : index
    %155 = vector.load %arg2[%c0_165, %c0_166] : memref<36x16xbf16, #tpu.memory_space<vmem>>, vector<36x16xbf16>
    %cst = arith.constant dense<0.000000e+00> : vector<64x16xf32>
    %156 = tpu.matmul %154, %155, %cst {dimension_numbers = #tpu.dot_dimension_numbers<[1], [0], [0], [1], [0, 0, 1, 1], [], []>} : vector<64x36xbf16>, vector<36x16xbf16>, vector<64x16xf32> -> vector<64x16xf32>
    %c0_167 = arith.constant 0 : index
    %c0_168 = arith.constant 0 : index
    %157 = vector.load %arg6[%c0_167, %c0_168] : memref<14x128xf32, #tpu.memory_space<vmem>>, vector<1x16xf32>
    %c1_169 = arith.constant 1 : index
    %c0_170 = arith.constant 0 : index
    %158 = vector.load %arg6[%c1_169, %c0_170] : memref<14x128xf32, #tpu.memory_space<vmem>>, vector<1x16xf32>
    %c2_171 = arith.constant 2 : index
    %c0_172 = arith.constant 0 : index
    %159 = vector.load %arg6[%c2_171, %c0_172] : memref<14x128xf32, #tpu.memory_space<vmem>>, vector<1x16xf32>
    %160 = vector.broadcast %157 : vector<1x16xf32> to vector<64x16xf32>
    %161 = arith.addf %156, %160 : vector<64x16xf32>
    %cst_173 = arith.constant 0.000000e+00 : f32
    %162 = vector.broadcast %cst_173 : f32 to vector<64x16xf32>
    %163 = arith.cmpf oge, %161, %162 : vector<64x16xf32>
    %cst_174 = arith.constant 2.000000e-01 : f32
    %164 = vector.broadcast %cst_174 : f32 to vector<64x16xf32>
    %165 = arith.mulf %164, %161 : vector<64x16xf32>
    %166 = arith.select %163, %161, %165 : vector<64x16xi1>, vector<64x16xf32>
    %167 = vector.broadcast %158 : vector<1x16xf32> to vector<64x16xf32>
    %168 = arith.mulf %166, %167 : vector<64x16xf32>
    %169 = vector.broadcast %159 : vector<1x16xf32> to vector<64x16xf32>
    %170 = arith.addf %168, %169 : vector<64x16xf32>
    %cst_175 = arith.constant 0.000000e+00 : f32
    %171 = vector.broadcast %cst_175 : f32 to vector<100x16xf32>
    %c0_176 = arith.constant 0 : index
    %c0_177 = arith.constant 0 : index
    %172 = vector.load %arg8[%c0_176, %c0_177] : memref<100x16xf32, #tpu.memory_space<vmem>>, vector<100x16xf32>
    tpu.vector_store %arg8[%c0_176, %c0_177], %171 {strides = array<i32>} : memref<100x16xf32, #tpu.memory_space<vmem>>, vector<100x16xf32>,
    %173 = vector.extract_strided_slice %170 {offsets = [0, 0], sizes = [8, 16], strides = [1, 1]} : vector<64x16xf32> to vector<8x16xf32>
    %c11 = arith.constant 11 : index
    %c0_178 = arith.constant 0 : index
    %174 = vector.load %arg8[%c11, %c0_178] : memref<100x16xf32, #tpu.memory_space<vmem>>, vector<8x16xf32>
    tpu.vector_store %arg8[%c11, %c0_178], %173 {strides = array<i32>} : memref<100x16xf32, #tpu.memory_space<vmem>>, vector<8x16xf32>,
    %175 = vector.extract_strided_slice %170 {offsets = [8, 0], sizes = [8, 16], strides = [1, 1]} : vector<64x16xf32> to vector<8x16xf32>
    %c21 = arith.constant 21 : index
    %c0_179 = arith.constant 0 : index
    %176 = vector.load %arg8[%c21, %c0_179] : memref<100x16xf32, #tpu.memory_space<vmem>>, vector<8x16xf32>
    tpu.vector_store %arg8[%c21, %c0_179], %175 {strides = array<i32>} : memref<100x16xf32, #tpu.memory_space<vmem>>, vector<8x16xf32>,
    %177 = vector.extract_strided_slice %170 {offsets = [16, 0], sizes = [8, 16], strides = [1, 1]} : vector<64x16xf32> to vector<8x16xf32>
    %c31 = arith.constant 31 : index
    %c0_180 = arith.constant 0 : index
    %178 = vector.load %arg8[%c31, %c0_180] : memref<100x16xf32, #tpu.memory_space<vmem>>, vector<8x16xf32>
    tpu.vector_store %arg8[%c31, %c0_180], %177 {strides = array<i32>} : memref<100x16xf32, #tpu.memory_space<vmem>>, vector<8x16xf32>,
    %179 = vector.extract_strided_slice %170 {offsets = [24, 0], sizes = [8, 16], strides = [1, 1]} : vector<64x16xf32> to vector<8x16xf32>
    %c41 = arith.constant 41 : index
    %c0_181 = arith.constant 0 : index
    %180 = vector.load %arg8[%c41, %c0_181] : memref<100x16xf32, #tpu.memory_space<vmem>>, vector<8x16xf32>
    tpu.vector_store %arg8[%c41, %c0_181], %179 {strides = array<i32>} : memref<100x16xf32, #tpu.memory_space<vmem>>, vector<8x16xf32>,
    %181 = vector.extract_strided_slice %170 {offsets = [32, 0], sizes = [8, 16], strides = [1, 1]} : vector<64x16xf32> to vector<8x16xf32>
    %c51 = arith.constant 51 : index
    %c0_182 = arith.constant 0 : index
    %182 = vector.load %arg8[%c51, %c0_182] : memref<100x16xf32, #tpu.memory_space<vmem>>, vector<8x16xf32>
    tpu.vector_store %arg8[%c51, %c0_182], %181 {strides = array<i32>} : memref<100x16xf32, #tpu.memory_space<vmem>>, vector<8x16xf32>,
    %183 = vector.extract_strided_slice %170 {offsets = [40, 0], sizes = [8, 16], strides = [1, 1]} : vector<64x16xf32> to vector<8x16xf32>
    %c61 = arith.constant 61 : index
    %c0_183 = arith.constant 0 : index
    %184 = vector.load %arg8[%c61, %c0_183] : memref<100x16xf32, #tpu.memory_space<vmem>>, vector<8x16xf32>
    tpu.vector_store %arg8[%c61, %c0_183], %183 {strides = array<i32>} : memref<100x16xf32, #tpu.memory_space<vmem>>, vector<8x16xf32>,
    %185 = vector.extract_strided_slice %170 {offsets = [48, 0], sizes = [8, 16], strides = [1, 1]} : vector<64x16xf32> to vector<8x16xf32>
    %c71 = arith.constant 71 : index
    %c0_184 = arith.constant 0 : index
    %186 = vector.load %arg8[%c71, %c0_184] : memref<100x16xf32, #tpu.memory_space<vmem>>, vector<8x16xf32>
    tpu.vector_store %arg8[%c71, %c0_184], %185 {strides = array<i32>} : memref<100x16xf32, #tpu.memory_space<vmem>>, vector<8x16xf32>,
    %187 = vector.extract_strided_slice %170 {offsets = [56, 0], sizes = [8, 16], strides = [1, 1]} : vector<64x16xf32> to vector<8x16xf32>
    %c81 = arith.constant 81 : index
    %c0_185 = arith.constant 0 : index
    %188 = vector.load %arg8[%c81, %c0_185] : memref<100x16xf32, #tpu.memory_space<vmem>>, vector<8x16xf32>
    tpu.vector_store %arg8[%c81, %c0_185], %187 {strides = array<i32>} : memref<100x16xf32, #tpu.memory_space<vmem>>, vector<8x16xf32>,
    %c0_186 = arith.constant 0 : index
    %c0_187 = arith.constant 0 : index
    %189 = tpu.strided_load %arg8[%c0_186, %c0_187] {strides = array<i32: 2, 1>} : memref<100x16xf32, #tpu.memory_space<vmem>>, vector<4x16xf32>
    %c20_188 = arith.constant 20 : index
    %c0_189 = arith.constant 0 : index
    %190 = tpu.strided_load %arg8[%c20_188, %c0_189] {strides = array<i32: 2, 1>} : memref<100x16xf32, #tpu.memory_space<vmem>>, vector<4x16xf32>
    %c40 = arith.constant 40 : index
    %c0_190 = arith.constant 0 : index
    %191 = tpu.strided_load %arg8[%c40, %c0_190] {strides = array<i32: 2, 1>} : memref<100x16xf32, #tpu.memory_space<vmem>>, vector<4x16xf32>
    %c60 = arith.constant 60 : index
    %c0_191 = arith.constant 0 : index
    %192 = tpu.strided_load %arg8[%c60, %c0_191] {strides = array<i32: 2, 1>} : memref<100x16xf32, #tpu.memory_space<vmem>>, vector<4x16xf32>
    %193 = tpu.concatenate %189, %190, %191, %192 in 0 : vector<4x16xf32>, vector<4x16xf32>, vector<4x16xf32>, vector<4x16xf32> -> vector<16x16xf32>
    %c1_192 = arith.constant 1 : index
    %c0_193 = arith.constant 0 : index
    %194 = tpu.strided_load %arg8[%c1_192, %c0_193] {strides = array<i32: 2, 1>} : memref<100x16xf32, #tpu.memory_space<vmem>>, vector<4x16xf32>
    %c21_194 = arith.constant 21 : index
    %c0_195 = arith.constant 0 : index
    %195 = tpu.strided_load %arg8[%c21_194, %c0_195] {strides = array<i32: 2, 1>} : memref<100x16xf32, #tpu.memory_space<vmem>>, vector<4x16xf32>
    %c41_196 = arith.constant 41 : index
    %c0_197 = arith.constant 0 : index
    %196 = tpu.strided_load %arg8[%c41_196, %c0_197] {strides = array<i32: 2, 1>} : memref<100x16xf32, #tpu.memory_space<vmem>>, vector<4x16xf32>
    %c61_198 = arith.constant 61 : index
    %c0_199 = arith.constant 0 : index
    %197 = tpu.strided_load %arg8[%c61_198, %c0_199] {strides = array<i32: 2, 1>} : memref<100x16xf32, #tpu.memory_space<vmem>>, vector<4x16xf32>
    %198 = tpu.concatenate %194, %195, %196, %197 in 0 : vector<4x16xf32>, vector<4x16xf32>, vector<4x16xf32>, vector<4x16xf32> -> vector<16x16xf32>
    %c2_200 = arith.constant 2 : index
    %c0_201 = arith.constant 0 : index
    %199 = tpu.strided_load %arg8[%c2_200, %c0_201] {strides = array<i32: 2, 1>} : memref<100x16xf32, #tpu.memory_space<vmem>>, vector<4x16xf32>
    %c22 = arith.constant 22 : index
    %c0_202 = arith.constant 0 : index
    %200 = tpu.strided_load %arg8[%c22, %c0_202] {strides = array<i32: 2, 1>} : memref<100x16xf32, #tpu.memory_space<vmem>>, vector<4x16xf32>
    %c42 = arith.constant 42 : index
    %c0_203 = arith.constant 0 : index
    %201 = tpu.strided_load %arg8[%c42, %c0_203] {strides = array<i32: 2, 1>} : memref<100x16xf32, #tpu.memory_space<vmem>>, vector<4x16xf32>
    %c62 = arith.constant 62 : index
    %c0_204 = arith.constant 0 : index
    %202 = tpu.strided_load %arg8[%c62, %c0_204] {strides = array<i32: 2, 1>} : memref<100x16xf32, #tpu.memory_space<vmem>>, vector<4x16xf32>
    %203 = tpu.concatenate %199, %200, %201, %202 in 0 : vector<4x16xf32>, vector<4x16xf32>, vector<4x16xf32>, vector<4x16xf32> -> vector<16x16xf32>
    %c10 = arith.constant 10 : index
    %c0_205 = arith.constant 0 : index
    %204 = tpu.strided_load %arg8[%c10, %c0_205] {strides = array<i32: 2, 1>} : memref<100x16xf32, #tpu.memory_space<vmem>>, vector<4x16xf32>
    %c30 = arith.constant 30 : index
    %c0_206 = arith.constant 0 : index
    %205 = tpu.strided_load %arg8[%c30, %c0_206] {strides = array<i32: 2, 1>} : memref<100x16xf32, #tpu.memory_space<vmem>>, vector<4x16xf32>
    %c50 = arith.constant 50 : index
    %c0_207 = arith.constant 0 : index
    %206 = tpu.strided_load %arg8[%c50, %c0_207] {strides = array<i32: 2, 1>} : memref<100x16xf32, #tpu.memory_space<vmem>>, vector<4x16xf32>
    %c70 = arith.constant 70 : index
    %c0_208 = arith.constant 0 : index
    %207 = tpu.strided_load %arg8[%c70, %c0_208] {strides = array<i32: 2, 1>} : memref<100x16xf32, #tpu.memory_space<vmem>>, vector<4x16xf32>
    %208 = tpu.concatenate %204, %205, %206, %207 in 0 : vector<4x16xf32>, vector<4x16xf32>, vector<4x16xf32>, vector<4x16xf32> -> vector<16x16xf32>
    %c11_209 = arith.constant 11 : index
    %c0_210 = arith.constant 0 : index
    %209 = tpu.strided_load %arg8[%c11_209, %c0_210] {strides = array<i32: 2, 1>} : memref<100x16xf32, #tpu.memory_space<vmem>>, vector<4x16xf32>
    %c31_211 = arith.constant 31 : index
    %c0_212 = arith.constant 0 : index
    %210 = tpu.strided_load %arg8[%c31_211, %c0_212] {strides = array<i32: 2, 1>} : memref<100x16xf32, #tpu.memory_space<vmem>>, vector<4x16xf32>
    %c51_213 = arith.constant 51 : index
    %c0_214 = arith.constant 0 : index
    %211 = tpu.strided_load %arg8[%c51_213, %c0_214] {strides = array<i32: 2, 1>} : memref<100x16xf32, #tpu.memory_space<vmem>>, vector<4x16xf32>
    %c71_215 = arith.constant 71 : index
    %c0_216 = arith.constant 0 : index
    %212 = tpu.strided_load %arg8[%c71_215, %c0_216] {strides = array<i32: 2, 1>} : memref<100x16xf32, #tpu.memory_space<vmem>>, vector<4x16xf32>
    %213 = tpu.concatenate %209, %210, %211, %212 in 0 : vector<4x16xf32>, vector<4x16xf32>, vector<4x16xf32>, vector<4x16xf32> -> vector<16x16xf32>
    %c12 = arith.constant 12 : index
    %c0_217 = arith.constant 0 : index
    %214 = tpu.strided_load %arg8[%c12, %c0_217] {strides = array<i32: 2, 1>} : memref<100x16xf32, #tpu.memory_space<vmem>>, vector<4x16xf32>
    %c32 = arith.constant 32 : index
    %c0_218 = arith.constant 0 : index
    %215 = tpu.strided_load %arg8[%c32, %c0_218] {strides = array<i32: 2, 1>} : memref<100x16xf32, #tpu.memory_space<vmem>>, vector<4x16xf32>
    %c52 = arith.constant 52 : index
    %c0_219 = arith.constant 0 : index
    %216 = tpu.strided_load %arg8[%c52, %c0_219] {strides = array<i32: 2, 1>} : memref<100x16xf32, #tpu.memory_space<vmem>>, vector<4x16xf32>
    %c72_220 = arith.constant 72 : index
    %c0_221 = arith.constant 0 : index
    %217 = tpu.strided_load %arg8[%c72_220, %c0_221] {strides = array<i32: 2, 1>} : memref<100x16xf32, #tpu.memory_space<vmem>>, vector<4x16xf32>
    %218 = tpu.concatenate %214, %215, %216, %217 in 0 : vector<4x16xf32>, vector<4x16xf32>, vector<4x16xf32>, vector<4x16xf32> -> vector<16x16xf32>
    %c20_222 = arith.constant 20 : index
    %c0_223 = arith.constant 0 : index
    %219 = tpu.strided_load %arg8[%c20_222, %c0_223] {strides = array<i32: 2, 1>} : memref<100x16xf32, #tpu.memory_space<vmem>>, vector<4x16xf32>
    %c40_224 = arith.constant 40 : index
    %c0_225 = arith.constant 0 : index
    %220 = tpu.strided_load %arg8[%c40_224, %c0_225] {strides = array<i32: 2, 1>} : memref<100x16xf32, #tpu.memory_space<vmem>>, vector<4x16xf32>
    %c60_226 = arith.constant 60 : index
    %c0_227 = arith.constant 0 : index
    %221 = tpu.strided_load %arg8[%c60_226, %c0_227] {strides = array<i32: 2, 1>} : memref<100x16xf32, #tpu.memory_space<vmem>>, vector<4x16xf32>
    %c80 = arith.constant 80 : index
    %c0_228 = arith.constant 0 : index
    %222 = tpu.strided_load %arg8[%c80, %c0_228] {strides = array<i32: 2, 1>} : memref<100x16xf32, #tpu.memory_space<vmem>>, vector<4x16xf32>
    %223 = tpu.concatenate %219, %220, %221, %222 in 0 : vector<4x16xf32>, vector<4x16xf32>, vector<4x16xf32>, vector<4x16xf32> -> vector<16x16xf32>
    %c21_229 = arith.constant 21 : index
    %c0_230 = arith.constant 0 : index
    %224 = tpu.strided_load %arg8[%c21_229, %c0_230] {strides = array<i32: 2, 1>} : memref<100x16xf32, #tpu.memory_space<vmem>>, vector<4x16xf32>
    %c41_231 = arith.constant 41 : index
    %c0_232 = arith.constant 0 : index
    %225 = tpu.strided_load %arg8[%c41_231, %c0_232] {strides = array<i32: 2, 1>} : memref<100x16xf32, #tpu.memory_space<vmem>>, vector<4x16xf32>
    %c61_233 = arith.constant 61 : index
    %c0_234 = arith.constant 0 : index
    %226 = tpu.strided_load %arg8[%c61_233, %c0_234] {strides = array<i32: 2, 1>} : memref<100x16xf32, #tpu.memory_space<vmem>>, vector<4x16xf32>
    %c81_235 = arith.constant 81 : index
    %c0_236 = arith.constant 0 : index
    %227 = tpu.strided_load %arg8[%c81_235, %c0_236] {strides = array<i32: 2, 1>} : memref<100x16xf32, #tpu.memory_space<vmem>>, vector<4x16xf32>
    %228 = tpu.concatenate %224, %225, %226, %227 in 0 : vector<4x16xf32>, vector<4x16xf32>, vector<4x16xf32>, vector<4x16xf32> -> vector<16x16xf32>
    %c22_237 = arith.constant 22 : index
    %c0_238 = arith.constant 0 : index
    %229 = tpu.strided_load %arg8[%c22_237, %c0_238] {strides = array<i32: 2, 1>} : memref<100x16xf32, #tpu.memory_space<vmem>>, vector<4x16xf32>
    %c42_239 = arith.constant 42 : index
    %c0_240 = arith.constant 0 : index
    %230 = tpu.strided_load %arg8[%c42_239, %c0_240] {strides = array<i32: 2, 1>} : memref<100x16xf32, #tpu.memory_space<vmem>>, vector<4x16xf32>
    %c62_241 = arith.constant 62 : index
    %c0_242 = arith.constant 0 : index
    %231 = tpu.strided_load %arg8[%c62_241, %c0_242] {strides = array<i32: 2, 1>} : memref<100x16xf32, #tpu.memory_space<vmem>>, vector<4x16xf32>
    %c82 = arith.constant 82 : index
    %c0_243 = arith.constant 0 : index
    %232 = tpu.strided_load %arg8[%c82, %c0_243] {strides = array<i32: 2, 1>} : memref<100x16xf32, #tpu.memory_space<vmem>>, vector<4x16xf32>
    %233 = tpu.concatenate %229, %230, %231, %232 in 0 : vector<4x16xf32>, vector<4x16xf32>, vector<4x16xf32>, vector<4x16xf32> -> vector<16x16xf32>
    %234 = tpu.concatenate %193, %198, %203, %208, %213, %218, %223, %228, %233 in 1 : vector<16x16xf32>, vector<16x16xf32>, vector<16x16xf32>, vector<16x16xf32>, vector<16x16xf32>, vector<16x16xf32>, vector<16x16xf32>, vector<16x16xf32>, vector<16x16xf32> -> vector<16x144xf32>
    %235 = arith.truncf %234 : vector<16x144xf32> to vector<16x144xbf16>
    %c0_244 = arith.constant 0 : index
    %c0_245 = arith.constant 0 : index
    %236 = vector.load %arg3[%c0_244, %c0_245] : memref<144x32xbf16, #tpu.memory_space<vmem>>, vector<144x32xbf16>
    %cst_246 = arith.constant dense<0.000000e+00> : vector<16x32xf32>
    %237 = tpu.matmul %235, %236, %cst_246 {dimension_numbers = #tpu.dot_dimension_numbers<[1], [0], [0], [1], [0, 0, 1, 1], [], []>} : vector<16x144xbf16>, vector<144x32xbf16>, vector<16x32xf32> -> vector<16x32xf32>
    %c3 = arith.constant 3 : index
    %c0_247 = arith.constant 0 : index
    %238 = vector.load %arg6[%c3, %c0_247] : memref<14x128xf32, #tpu.memory_space<vmem>>, vector<1x32xf32>
    %c4 = arith.constant 4 : index
    %c0_248 = arith.constant 0 : index
    %239 = vector.load %arg6[%c4, %c0_248] : memref<14x128xf32, #tpu.memory_space<vmem>>, vector<1x32xf32>
    %c5 = arith.constant 5 : index
    %c0_249 = arith.constant 0 : index
    %240 = vector.load %arg6[%c5, %c0_249] : memref<14x128xf32, #tpu.memory_space<vmem>>, vector<1x32xf32>
    %241 = vector.broadcast %238 : vector<1x32xf32> to vector<16x32xf32>
    %242 = arith.addf %237, %241 : vector<16x32xf32>
    %cst_250 = arith.constant 0.000000e+00 : f32
    %243 = vector.broadcast %cst_250 : f32 to vector<16x32xf32>
    %244 = arith.cmpf oge, %242, %243 : vector<16x32xf32>
    %cst_251 = arith.constant 2.000000e-01 : f32
    %245 = vector.broadcast %cst_251 : f32 to vector<16x32xf32>
    %246 = arith.mulf %245, %242 : vector<16x32xf32>
    %247 = arith.select %244, %242, %246 : vector<16x32xi1>, vector<16x32xf32>
    %248 = vector.broadcast %239 : vector<1x32xf32> to vector<16x32xf32>
    %249 = arith.mulf %247, %248 : vector<16x32xf32>
    %250 = vector.broadcast %240 : vector<1x32xf32> to vector<16x32xf32>
    %251 = arith.addf %249, %250 : vector<16x32xf32>
    %cst_252 = arith.constant 0.000000e+00 : f32
    %252 = vector.broadcast %cst_252 : f32 to vector<36x32xf32>
    %c0_253 = arith.constant 0 : index
    %c0_254 = arith.constant 0 : index
    %253 = vector.load %arg9[%c0_253, %c0_254] : memref<36x32xf32, #tpu.memory_space<vmem>>, vector<36x32xf32>
    tpu.vector_store %arg9[%c0_253, %c0_254], %252 {strides = array<i32>} : memref<36x32xf32, #tpu.memory_space<vmem>>, vector<36x32xf32>,
    %254 = vector.extract_strided_slice %251 {offsets = [0, 0], sizes = [4, 32], strides = [1, 1]} : vector<16x32xf32> to vector<4x32xf32>
    %c7 = arith.constant 7 : index
    %c0_255 = arith.constant 0 : index
    %255 = vector.load %arg9[%c7, %c0_255] : memref<36x32xf32, #tpu.memory_space<vmem>>, vector<4x32xf32>
    tpu.vector_store %arg9[%c7, %c0_255], %254 {strides = array<i32>} : memref<36x32xf32, #tpu.memory_space<vmem>>, vector<4x32xf32>,
    %256 = vector.extract_strided_slice %251 {offsets = [4, 0], sizes = [4, 32], strides = [1, 1]} : vector<16x32xf32> to vector<4x32xf32>
    %c13 = arith.constant 13 : index
    %c0_256 = arith.constant 0 : index
    %257 = vector.load %arg9[%c13, %c0_256] : memref<36x32xf32, #tpu.memory_space<vmem>>, vector<4x32xf32>
    tpu.vector_store %arg9[%c13, %c0_256], %256 {strides = array<i32>} : memref<36x32xf32, #tpu.memory_space<vmem>>, vector<4x32xf32>,
    %258 = vector.extract_strided_slice %251 {offsets = [8, 0], sizes = [4, 32], strides = [1, 1]} : vector<16x32xf32> to vector<4x32xf32>
    %c19_257 = arith.constant 19 : index
    %c0_258 = arith.constant 0 : index
    %259 = vector.load %arg9[%c19_257, %c0_258] : memref<36x32xf32, #tpu.memory_space<vmem>>, vector<4x32xf32>
    tpu.vector_store %arg9[%c19_257, %c0_258], %258 {strides = array<i32>} : memref<36x32xf32, #tpu.memory_space<vmem>>, vector<4x32xf32>,
    %260 = vector.extract_strided_slice %251 {offsets = [12, 0], sizes = [4, 32], strides = [1, 1]} : vector<16x32xf32> to vector<4x32xf32>
    %c25 = arith.constant 25 : index
    %c0_259 = arith.constant 0 : index
    %261 = vector.load %arg9[%c25, %c0_259] : memref<36x32xf32, #tpu.memory_space<vmem>>, vector<4x32xf32>
    tpu.vector_store %arg9[%c25, %c0_259], %260 {strides = array<i32>} : memref<36x32xf32, #tpu.memory_space<vmem>>, vector<4x32xf32>,
    %c0_260 = arith.constant 0 : index
    %c0_261 = arith.constant 0 : index
    %262 = tpu.strided_load %arg9[%c0_260, %c0_261] {strides = array<i32: 2, 1>} : memref<36x32xf32, #tpu.memory_space<vmem>>, vector<2x32xf32>
    %c12_262 = arith.constant 12 : index
    %c0_263 = arith.constant 0 : index
    %263 = tpu.strided_load %arg9[%c12_262, %c0_263] {strides = array<i32: 2, 1>} : memref<36x32xf32, #tpu.memory_space<vmem>>, vector<2x32xf32>
    %264 = tpu.concatenate %262, %263 in 0 : vector<2x32xf32>, vector<2x32xf32> -> vector<4x32xf32>
    %c1_264 = arith.constant 1 : index
    %c0_265 = arith.constant 0 : index
    %265 = tpu.strided_load %arg9[%c1_264, %c0_265] {strides = array<i32: 2, 1>} : memref<36x32xf32, #tpu.memory_space<vmem>>, vector<2x32xf32>
    %c13_266 = arith.constant 13 : index
    %c0_267 = arith.constant 0 : index
    %266 = tpu.strided_load %arg9[%c13_266, %c0_267] {strides = array<i32: 2, 1>} : memref<36x32xf32, #tpu.memory_space<vmem>>, vector<2x32xf32>
    %267 = tpu.concatenate %265, %266 in 0 : vector<2x32xf32>, vector<2x32xf32> -> vector<4x32xf32>
    %c2_268 = arith.constant 2 : index
    %c0_269 = arith.constant 0 : index
    %268 = tpu.strided_load %arg9[%c2_268, %c0_269] {strides = array<i32: 2, 1>} : memref<36x32xf32, #tpu.memory_space<vmem>>, vector<2x32xf32>
    %c14 = arith.constant 14 : index
    %c0_270 = arith.constant 0 : index
    %269 = tpu.strided_load %arg9[%c14, %c0_270] {strides = array<i32: 2, 1>} : memref<36x32xf32, #tpu.memory_space<vmem>>, vector<2x32xf32>
    %270 = tpu.concatenate %268, %269 in 0 : vector<2x32xf32>, vector<2x32xf32> -> vector<4x32xf32>
    %c6 = arith.constant 6 : index
    %c0_271 = arith.constant 0 : index
    %271 = tpu.strided_load %arg9[%c6, %c0_271] {strides = array<i32: 2, 1>} : memref<36x32xf32, #tpu.memory_space<vmem>>, vector<2x32xf32>
    %c18_272 = arith.constant 18 : index
    %c0_273 = arith.constant 0 : index
    %272 = tpu.strided_load %arg9[%c18_272, %c0_273] {strides = array<i32: 2, 1>} : memref<36x32xf32, #tpu.memory_space<vmem>>, vector<2x32xf32>
    %273 = tpu.concatenate %271, %272 in 0 : vector<2x32xf32>, vector<2x32xf32> -> vector<4x32xf32>
    %c7_274 = arith.constant 7 : index
    %c0_275 = arith.constant 0 : index
    %274 = tpu.strided_load %arg9[%c7_274, %c0_275] {strides = array<i32: 2, 1>} : memref<36x32xf32, #tpu.memory_space<vmem>>, vector<2x32xf32>
    %c19_276 = arith.constant 19 : index
    %c0_277 = arith.constant 0 : index
    %275 = tpu.strided_load %arg9[%c19_276, %c0_277] {strides = array<i32: 2, 1>} : memref<36x32xf32, #tpu.memory_space<vmem>>, vector<2x32xf32>
    %276 = tpu.concatenate %274, %275 in 0 : vector<2x32xf32>, vector<2x32xf32> -> vector<4x32xf32>
    %c8 = arith.constant 8 : index
    %c0_278 = arith.constant 0 : index
    %277 = tpu.strided_load %arg9[%c8, %c0_278] {strides = array<i32: 2, 1>} : memref<36x32xf32, #tpu.memory_space<vmem>>, vector<2x32xf32>
    %c20_279 = arith.constant 20 : index
    %c0_280 = arith.constant 0 : index
    %278 = tpu.strided_load %arg9[%c20_279, %c0_280] {strides = array<i32: 2, 1>} : memref<36x32xf32, #tpu.memory_space<vmem>>, vector<2x32xf32>
    %279 = tpu.concatenate %277, %278 in 0 : vector<2x32xf32>, vector<2x32xf32> -> vector<4x32xf32>
    %c12_281 = arith.constant 12 : index
    %c0_282 = arith.constant 0 : index
    %280 = tpu.strided_load %arg9[%c12_281, %c0_282] {strides = array<i32: 2, 1>} : memref<36x32xf32, #tpu.memory_space<vmem>>, vector<2x32xf32>
    %c24 = arith.constant 24 : index
    %c0_283 = arith.constant 0 : index
    %281 = tpu.strided_load %arg9[%c24, %c0_283] {strides = array<i32: 2, 1>} : memref<36x32xf32, #tpu.memory_space<vmem>>, vector<2x32xf32>
    %282 = tpu.concatenate %280, %281 in 0 : vector<2x32xf32>, vector<2x32xf32> -> vector<4x32xf32>
    %c13_284 = arith.constant 13 : index
    %c0_285 = arith.constant 0 : index
    %283 = tpu.strided_load %arg9[%c13_284, %c0_285] {strides = array<i32: 2, 1>} : memref<36x32xf32, #tpu.memory_space<vmem>>, vector<2x32xf32>
    %c25_286 = arith.constant 25 : index
    %c0_287 = arith.constant 0 : index
    %284 = tpu.strided_load %arg9[%c25_286, %c0_287] {strides = array<i32: 2, 1>} : memref<36x32xf32, #tpu.memory_space<vmem>>, vector<2x32xf32>
    %285 = tpu.concatenate %283, %284 in 0 : vector<2x32xf32>, vector<2x32xf32> -> vector<4x32xf32>
    %c14_288 = arith.constant 14 : index
    %c0_289 = arith.constant 0 : index
    %286 = tpu.strided_load %arg9[%c14_288, %c0_289] {strides = array<i32: 2, 1>} : memref<36x32xf32, #tpu.memory_space<vmem>>, vector<2x32xf32>
    %c26 = arith.constant 26 : index
    %c0_290 = arith.constant 0 : index
    %287 = tpu.strided_load %arg9[%c26, %c0_290] {strides = array<i32: 2, 1>} : memref<36x32xf32, #tpu.memory_space<vmem>>, vector<2x32xf32>
    %288 = tpu.concatenate %286, %287 in 0 : vector<2x32xf32>, vector<2x32xf32> -> vector<4x32xf32>
    %289 = tpu.concatenate %264, %267, %270, %273, %276, %279, %282, %285, %288 in 1 : vector<4x32xf32>, vector<4x32xf32>, vector<4x32xf32>, vector<4x32xf32>, vector<4x32xf32>, vector<4x32xf32>, vector<4x32xf32>, vector<4x32xf32>, vector<4x32xf32> -> vector<4x288xf32>
    %290 = arith.truncf %289 : vector<4x288xf32> to vector<4x288xbf16>
    %c0_291 = arith.constant 0 : index
    %c0_292 = arith.constant 0 : index
    %291 = vector.load %arg4[%c0_291, %c0_292] : memref<288x64xbf16, #tpu.memory_space<vmem>>, vector<288x64xbf16>
    %cst_293 = arith.constant dense<0.000000e+00> : vector<4x64xf32>
    %292 = tpu.matmul %290, %291, %cst_293 {dimension_numbers = #tpu.dot_dimension_numbers<[1], [0], [0], [1], [0, 0, 1, 1], [], []>} : vector<4x288xbf16>, vector<288x64xbf16>, vector<4x64xf32> -> vector<4x64xf32>
    %c6_294 = arith.constant 6 : index
    %c0_295 = arith.constant 0 : index
    %293 = vector.load %arg6[%c6_294, %c0_295] : memref<14x128xf32, #tpu.memory_space<vmem>>, vector<1x64xf32>
    %c7_296 = arith.constant 7 : index
    %c0_297 = arith.constant 0 : index
    %294 = vector.load %arg6[%c7_296, %c0_297] : memref<14x128xf32, #tpu.memory_space<vmem>>, vector<1x64xf32>
    %c8_298 = arith.constant 8 : index
    %c0_299 = arith.constant 0 : index
    %295 = vector.load %arg6[%c8_298, %c0_299] : memref<14x128xf32, #tpu.memory_space<vmem>>, vector<1x64xf32>
    %296 = vector.broadcast %293 : vector<1x64xf32> to vector<4x64xf32>
    %297 = arith.addf %292, %296 : vector<4x64xf32>
    %cst_300 = arith.constant 0.000000e+00 : f32
    %298 = vector.broadcast %cst_300 : f32 to vector<4x64xf32>
    %299 = arith.cmpf oge, %297, %298 : vector<4x64xf32>
    %cst_301 = arith.constant 2.000000e-01 : f32
    %300 = vector.broadcast %cst_301 : f32 to vector<4x64xf32>
    %301 = arith.mulf %300, %297 : vector<4x64xf32>
    %302 = arith.select %299, %297, %301 : vector<4x64xi1>, vector<4x64xf32>
    %303 = vector.broadcast %294 : vector<1x64xf32> to vector<4x64xf32>
    %304 = arith.mulf %302, %303 : vector<4x64xf32>
    %305 = vector.broadcast %295 : vector<1x64xf32> to vector<4x64xf32>
    %306 = arith.addf %304, %305 : vector<4x64xf32>
    %cst_302 = arith.constant 0.000000e+00 : f32
    %307 = vector.broadcast %cst_302 : f32 to vector<16x64xf32>
    %c0_303 = arith.constant 0 : index
    %c0_304 = arith.constant 0 : index
    %308 = vector.load %arg10[%c0_303, %c0_304] : memref<16x64xf32, #tpu.memory_space<vmem>>, vector<16x64xf32>
    tpu.vector_store %arg10[%c0_303, %c0_304], %307 {strides = array<i32>} : memref<16x64xf32, #tpu.memory_space<vmem>>, vector<16x64xf32>,
    %309 = vector.extract_strided_slice %306 {offsets = [0, 0], sizes = [2, 64], strides = [1, 1]} : vector<4x64xf32> to vector<2x64xf32>
    %c5_305 = arith.constant 5 : index
    %c0_306 = arith.constant 0 : index
    %310 = vector.load %arg10[%c5_305, %c0_306] : memref<16x64xf32, #tpu.memory_space<vmem>>, vector<2x64xf32>
    tpu.vector_store %arg10[%c5_305, %c0_306], %309 {strides = array<i32>} : memref<16x64xf32, #tpu.memory_space<vmem>>, vector<2x64xf32>,
    %311 = vector.extract_strided_slice %306 {offsets = [2, 0], sizes = [2, 64], strides = [1, 1]} : vector<4x64xf32> to vector<2x64xf32>
    %c9 = arith.constant 9 : index
    %c0_307 = arith.constant 0 : index
    %312 = vector.load %arg10[%c9, %c0_307] : memref<16x64xf32, #tpu.memory_space<vmem>>, vector<2x64xf32>
    tpu.vector_store %arg10[%c9, %c0_307], %311 {strides = array<i32>} : memref<16x64xf32, #tpu.memory_space<vmem>>, vector<2x64xf32>,
    %c0_308 = arith.constant 0 : index
    %c0_309 = arith.constant 0 : index
    %313 = vector.load %arg10[%c0_308, %c0_309] : memref<16x64xf32, #tpu.memory_space<vmem>>, vector<1x64xf32>
    %c1_310 = arith.constant 1 : index
    %c0_311 = arith.constant 0 : index
    %314 = vector.load %arg10[%c1_310, %c0_311] : memref<16x64xf32, #tpu.memory_space<vmem>>, vector<1x64xf32>
    %c2_312 = arith.constant 2 : index
    %c0_313 = arith.constant 0 : index
    %315 = vector.load %arg10[%c2_312, %c0_313] : memref<16x64xf32, #tpu.memory_space<vmem>>, vector<1x64xf32>
    %c4_314 = arith.constant 4 : index
    %c0_315 = arith.constant 0 : index
    %316 = vector.load %arg10[%c4_314, %c0_315] : memref<16x64xf32, #tpu.memory_space<vmem>>, vector<1x64xf32>
    %c5_316 = arith.constant 5 : index
    %c0_317 = arith.constant 0 : index
    %317 = vector.load %arg10[%c5_316, %c0_317] : memref<16x64xf32, #tpu.memory_space<vmem>>, vector<1x64xf32>
    %c6_318 = arith.constant 6 : index
    %c0_319 = arith.constant 0 : index
    %318 = vector.load %arg10[%c6_318, %c0_319] : memref<16x64xf32, #tpu.memory_space<vmem>>, vector<1x64xf32>
    %c8_320 = arith.constant 8 : index
    %c0_321 = arith.constant 0 : index
    %319 = vector.load %arg10[%c8_320, %c0_321] : memref<16x64xf32, #tpu.memory_space<vmem>>, vector<1x64xf32>
    %c9_322 = arith.constant 9 : index
    %c0_323 = arith.constant 0 : index
    %320 = vector.load %arg10[%c9_322, %c0_323] : memref<16x64xf32, #tpu.memory_space<vmem>>, vector<1x64xf32>
    %c10_324 = arith.constant 10 : index
    %c0_325 = arith.constant 0 : index
    %321 = vector.load %arg10[%c10_324, %c0_325] : memref<16x64xf32, #tpu.memory_space<vmem>>, vector<1x64xf32>
    %322 = tpu.concatenate %313, %314, %315, %316, %317, %318, %319, %320, %321 in 1 : vector<1x64xf32>, vector<1x64xf32>, vector<1x64xf32>, vector<1x64xf32>, vector<1x64xf32>, vector<1x64xf32>, vector<1x64xf32>, vector<1x64xf32>, vector<1x64xf32> -> vector<1x576xf32>
    %323 = arith.truncf %322 : vector<1x576xf32> to vector<1x576xbf16>
    %c0_326 = arith.constant 0 : index
    %c0_327 = arith.constant 0 : index
    %324 = vector.load %arg5[%c0_326, %c0_327] : memref<576x128xbf16, #tpu.memory_space<vmem>>, vector<576x128xbf16>
    %cst_328 = arith.constant dense<0.000000e+00> : vector<1x128xf32>
    %325 = tpu.matmul %323, %324, %cst_328 {dimension_numbers = #tpu.dot_dimension_numbers<[1], [0], [0], [1], [0, 0, 1, 1], [], []>} : vector<1x576xbf16>, vector<576x128xbf16>, vector<1x128xf32> -> vector<1x128xf32>
    %c9_329 = arith.constant 9 : index
    %c0_330 = arith.constant 0 : index
    %326 = vector.load %arg6[%c9_329, %c0_330] : memref<14x128xf32, #tpu.memory_space<vmem>>, vector<1x128xf32>
    %c10_331 = arith.constant 10 : index
    %c0_332 = arith.constant 0 : index
    %327 = vector.load %arg6[%c10_331, %c0_332] : memref<14x128xf32, #tpu.memory_space<vmem>>, vector<1x128xf32>
    %c11_333 = arith.constant 11 : index
    %c0_334 = arith.constant 0 : index
    %328 = vector.load %arg6[%c11_333, %c0_334] : memref<14x128xf32, #tpu.memory_space<vmem>>, vector<1x128xf32>
    %329 = arith.addf %325, %326 : vector<1x128xf32>
    %cst_335 = arith.constant 0.000000e+00 : f32
    %330 = vector.broadcast %cst_335 : f32 to vector<1x128xf32>
    %331 = arith.cmpf oge, %329, %330 : vector<1x128xf32>
    %cst_336 = arith.constant 2.000000e-01 : f32
    %332 = vector.broadcast %cst_336 : f32 to vector<1x128xf32>
    %333 = arith.mulf %332, %329 : vector<1x128xf32>
    %334 = arith.select %331, %329, %333 : vector<1x128xi1>, vector<1x128xf32>
    %335 = arith.mulf %334, %327 : vector<1x128xf32>
    %336 = arith.addf %335, %328 : vector<1x128xf32>
    %c13_337 = arith.constant 13 : index
    %c0_338 = arith.constant 0 : index
    %337 = vector.load %arg6[%c13_337, %c0_338] : memref<14x128xf32, #tpu.memory_space<vmem>>, vector<1x128xf32>
    %338 = arith.mulf %336, %337 : vector<1x128xf32>
    %cst_339 = arith.constant dense<0.000000e+00> : vector<1xf32>
    %339 = vector.multi_reduction <add>, %338, %cst_339 [1] : vector<1x128xf32> to vector<1xf32>
    %340 = vector.shape_cast %339 : vector<1xf32> to vector<1x1xf32>
    %cst_340 = arith.constant dense<0.000000e+00> : vector<1xf32>
    %341 = vector.multi_reduction <add>, %340, %cst_340 [0] : vector<1x1xf32> to vector<1xf32>
    %342 = vector.shape_cast %341 : vector<1xf32> to vector<1x1xf32>
    %c12_341 = arith.constant 12 : index
    %c0_342 = arith.constant 0 : index
    %343 = vector.load %arg6[%c12_341, %c0_342] : memref<14x128xf32, #tpu.memory_space<vmem>>, vector<1x1xf32>
    %344 = arith.addf %342, %343 : vector<1x1xf32>
    %345 = arith.negf %344 : vector<1x1xf32>
    %346 = math.exp %345 : vector<1x1xf32>
    %cst_343 = arith.constant 1.000000e+00 : f32
    %347 = vector.broadcast %cst_343 : f32 to vector<1x1xf32>
    %348 = arith.addf %347, %346 : vector<1x1xf32>
    %349 = arith.divf %347, %348 : vector<1x1xf32>
    %c0_344 = arith.constant 0 : index
    %c0_345 = arith.constant 0 : index
    %c0_346 = arith.constant 0 : index
    %350 = vector.load %arg7[%c0_344, %c0_345, %c0_346] : memref<1x1x1xf32, #tpu.memory_space<vmem>>, vector<1x1x1xf32>
    %351 = vector.shape_cast %350 : vector<1x1x1xf32> to vector<1x1xf32>
    %352 = vector.shape_cast %349 : vector<1x1xf32> to vector<1x1x1xf32>
    tpu.vector_store %arg7[%c0_344, %c0_345, %c0_346], %352 {strides = array<i32>} : memref<1x1x1xf32, #tpu.memory_space<vmem>>, vector<1x1x1xf32>,
    return
  }
  func.func @transform_0(%arg0: i32) -> (i32, i32, i32) {
    %c0_i32 = arith.constant 0 : i32
    %c0_i32_0 = arith.constant 0 : i32
    %c0_i32_1 = arith.constant 0 : i32
    return %arg0, %c0_i32, %c0_i32_0 : i32, i32, i32
  }
  func.func @transform_1(%arg0: i32) -> (i32, i32) {
    %c0_i32 = arith.constant 0 : i32
    %c0_i32_0 = arith.constant 0 : i32
    %c0_i32_1 = arith.constant 0 : i32
    return %c0_i32, %c0_i32_0 : i32, i32
  }
  func.func @transform_2(%arg0: i32) -> (i32, i32) {
    %c0_i32 = arith.constant 0 : i32
    %c0_i32_0 = arith.constant 0 : i32
    %c0_i32_1 = arith.constant 0 : i32
    return %c0_i32, %c0_i32_0 : i32, i32
  }
  func.func @transform_3(%arg0: i32) -> (i32, i32) {
    %c0_i32 = arith.constant 0 : i32
    %c0_i32_0 = arith.constant 0 : i32
    %c0_i32_1 = arith.constant 0 : i32
    return %c0_i32, %c0_i32_0 : i32, i32
  }
  func.func @transform_4(%arg0: i32) -> (i32, i32) {
    %c0_i32 = arith.constant 0 : i32
    %c0_i32_0 = arith.constant 0 : i32
    %c0_i32_1 = arith.constant 0 : i32
    return %c0_i32, %c0_i32_0 : i32, i32
  }
  func.func @transform_5(%arg0: i32) -> (i32, i32) {
    %c0_i32 = arith.constant 0 : i32
    %c0_i32_0 = arith.constant 0 : i32
    %c0_i32_1 = arith.constant 0 : i32
    return %c0_i32, %c0_i32_0 : i32, i32
  }
  func.func @transform_6(%arg0: i32) -> (i32, i32, i32) {
    %c0_i32 = arith.constant 0 : i32
    %c0_i32_0 = arith.constant 0 : i32
    %c0_i32_1 = arith.constant 0 : i32
    return %arg0, %c0_i32, %c0_i32_0 : i32, i32, i32
  }
}

</mosaic_0001>

<llo_original>
// kernel: tpu_custom_call.1
$region0: #{tpu_custom_call.1}
  #allocation0 [shape = 'u32[]', space=smem, size = 0x4, offset = 0x4, fixed_abs, tag = 'smem constant byte address 0x4 - core index']
  #allocation1 [shape = 'u32[144,128]{1,0:T(1,128)}', space=vmem, size = 0x12000, scoped, tag = 'internal scratch']
  #allocation2 [shape = 'f32[100,16]{1,0:T(8,128)}', space=vmem, size = 0xd000, scoped, tag = 'scratch operand']
  #allocation3 [shape = 'f32[36,32]{1,0:T(8,128)}', space=vmem, size = 0x5000, scoped, tag = 'scratch operand']
  #allocation4 [shape = 'f32[16,64]{1,0:T(8,128)}', space=vmem, size = 0x2000, scoped, tag = 'scratch operand']
  %s0 = inlined_call_operand.vmem [shape: f32[2,324,4], index: 0, kind: input, shape index: {}]
  %s1 = inlined_call_operand.vmem [shape: bf16[36,16], index: 1, kind: input, shape index: {}]
  %s2 = inlined_call_operand.vmem [shape: bf16[144,32], index: 2, kind: input, shape index: {}]
  %s3 = inlined_call_operand.vmem [shape: bf16[288,64], index: 3, kind: input, shape index: {}]
  %s4 = inlined_call_operand.vmem [shape: bf16[576,128], index: 4, kind: input, shape index: {}]
  %s5 = inlined_call_operand.vmem [shape: f32[14,128], index: 5, kind: input, shape index: {}]
  %s6 = inlined_call_operand.vmem [shape: f32[2,1,1], index: 6, kind: output, shape index: {}]
  %s7 = sld [smem:[#allocation0]]
  $region57: #{tpu_custom_call.1} parent=0
    _
  %s9 = ssub.s32 1, %s7
  %s10 = scalar_select 0, %s9, %s7
  loop: start=0, step=1, limit=4
  $region2: #{tpu_custom_call.1} parent=0 // loop_pre_header
    _
  $region3: #{tpu_custom_call.1} parent=0 // loop_header
    %s12 = sphi 0, %s16
    %p13 = scmp.ge.s32.totalorder %s12, 4
    %s22 = sphi 0, %s24
    %s25 = sphi 0, %s22
    %s26 = sphi 0, %s25
    %s42 = sphi 0, %s26
    %s46 = sphi 0, %s46
    %s48 = sphi 0, %s46
    %s49 = sphi 0, %s48
    %s63 = sphi 0, %s49
    %s67 = sphi 0, %s67
    %s69 = sphi 0, %s67
    %s70 = sphi 0, %s69
    %s84 = sphi 0, %s70
    %s88 = sphi 0, %s88
    %s90 = sphi 0, %s88
    %s91 = sphi 0, %s90
    %s105 = sphi 0, %s91
    %s109 = sphi 0, %s109
    %s111 = sphi 0, %s109
    %s112 = sphi 0, %s111
    %s126 = sphi 0, %s112
    %s130 = sphi 0, %s130
    %s132 = sphi 0, %s130
    %s133 = sphi 0, %s132
    %s147 = sphi 0, %s133
    %s153 = sphi 0, %s155
    %s156 = sphi 0, %s153
    %s157 = sphi 0, %s156
    %s173 = sphi 0, %s157
  $region4: #{tpu_custom_call.1} parent=0 // loop_header_branch
    %15 = sbr.rel (%p13) target = $region8
  $region5: #{tpu_custom_call.1} parent=0 // loop_body
    %s17 = ssub.s32 %s12, 1
    %s18 = ssub.s32 %s12, 2
    %s19 = sadd.s32 %s12, 1
    %s20 = ssub.s32 %s12, %s19
    %p21 = scmp.eq.s32.totalorder %s20, 0
    %s23 = sadd.s32 %s22, 1
    %s24 = scalar_select %p21, %s22, %s23
    %p27 = pneg %p21
    %p28 = scmp.eq.s32.totalorder %s12, 1
    %p29 = por %p27, %p28
    %p30 = scmp.ne.s32.totalorder %s22, %s25
    %p31 = scmp.eq.s32.totalorder %s12, 0
    %p32 = por %p30, %p31
    %p33 = scmp.ne.s32.totalorder %s22, %s25
    %p34 = scmp.eq.s32.totalorder %s17, 1
    %p35 = por %p33, %p34
    %p36 = scmp.ne.s32.totalorder %s25, %s26
    %p37 = scmp.eq.s32.totalorder %s17, 0
    %p38 = por %p36, %p37
    %p39 = scmp.ne.s32.totalorder %s25, %s26
    %p40 = scmp.eq.s32.totalorder %s18, 1
    %p41 = por %p39, %p40
    %p43 = scmp.ne.s32.totalorder %s26, %s42
    %p44 = scmp.eq.s32.totalorder %s18, 0
    %p45 = por %p43, %p44
    %s47 = sadd.s32 %s46, 1
    %p50 = scmp.eq.s32.totalorder %s12, 1
    %p51 = scmp.ne.s32.totalorder %s46, %s48
    %p52 = scmp.eq.s32.totalorder %s12, 0
    %p53 = por %p51, %p52
    %p54 = scmp.ne.s32.totalorder %s46, %s48
    %p55 = scmp.eq.s32.totalorder %s17, 1
    %p56 = por %p54, %p55
    %p57 = scmp.ne.s32.totalorder %s48, %s49
    %p58 = scmp.eq.s32.totalorder %s17, 0
    %p59 = por %p57, %p58
    %p60 = scmp.ne.s32.totalorder %s48, %s49
    %p61 = scmp.eq.s32.totalorder %s18, 1
    %p62 = por %p60, %p61
    %p64 = scmp.ne.s32.totalorder %s49, %s63
    %p65 = scmp.eq.s32.totalorder %s18, 0
    %p66 = por %p64, %p65
    %s68 = sadd.s32 %s67, 1
    %p71 = scmp.eq.s32.totalorder %s12, 1
    %p72 = scmp.ne.s32.totalorder %s67, %s69
    %p73 = scmp.eq.s32.totalorder %s12, 0
    %p74 = por %p72, %p73
    %p75 = scmp.ne.s32.totalorder %s67, %s69
    %p76 = scmp.eq.s32.totalorder %s17, 1
    %p77 = por %p75, %p76
    %p78 = scmp.ne.s32.totalorder %s69, %s70
    %p79 = scmp.eq.s32.totalorder %s17, 0
    %p80 = por %p78, %p79
    %p81 = scmp.ne.s32.totalorder %s69, %s70
    %p82 = scmp.eq.s32.totalorder %s18, 1
    %p83 = por %p81, %p82
    %p85 = scmp.ne.s32.totalorder %s70, %s84
    %p86 = scmp.eq.s32.totalorder %s18, 0
    %p87 = por %p85, %p86
    %s89 = sadd.s32 %s88, 1
    %p92 = scmp.eq.s32.totalorder %s12, 1
    %p93 = scmp.ne.s32.totalorder %s88, %s90
    %p94 = scmp.eq.s32.totalorder %s12, 0
    %p95 = por %p93, %p94
    %p96 = scmp.ne.s32.totalorder %s88, %s90
    %p97 = scmp.eq.s32.totalorder %s17, 1
    %p98 = por %p96, %p97
    %p99 = scmp.ne.s32.totalorder %s90, %s91
    %p100 = scmp.eq.s32.totalorder %s17, 0
    %p101 = por %p99, %p100
    %p102 = scmp.ne.s32.totalorder %s90, %s91
    %p103 = scmp.eq.s32.totalorder %s18, 1
    %p104 = por %p102, %p103
    %p106 = scmp.ne.s32.totalorder %s91, %s105
    %p107 = scmp.eq.s32.totalorder %s18, 0
    %p108 = por %p106, %p107
    %s110 = sadd.s32 %s109, 1
    %p113 = scmp.eq.s32.totalorder %s12, 1
    %p114 = scmp.ne.s32.totalorder %s109, %s111
    %p115 = scmp.eq.s32.totalorder %s12, 0
    %p116 = por %p114, %p115
    %p117 = scmp.ne.s32.totalorder %s109, %s111
    %p118 = scmp.eq.s32.totalorder %s17, 1
    %p119 = por %p117, %p118
    %p120 = scmp.ne.s32.totalorder %s111, %s112
    %p121 = scmp.eq.s32.totalorder %s17, 0
    %p122 = por %p120, %p121
    %p123 = scmp.ne.s32.totalorder %s111, %s112
    %p124 = scmp.eq.s32.totalorder %s18, 1
    %p125 = por %p123, %p124
    %p127 = scmp.ne.s32.totalorder %s112, %s126
    %p128 = scmp.eq.s32.totalorder %s18, 0
    %p129 = por %p127, %p128
    %s131 = sadd.s32 %s130, 1
    %p134 = scmp.eq.s32.totalorder %s12, 1
    %p135 = scmp.ne.s32.totalorder %s130, %s132
    %p136 = scmp.eq.s32.totalorder %s12, 0
    %p137 = por %p135, %p136
    %p138 = scmp.ne.s32.totalorder %s130, %s132
    %p139 = scmp.eq.s32.totalorder %s17, 1
    %p140 = por %p138, %p139
    %p141 = scmp.ne.s32.totalorder %s132, %s133
    %p142 = scmp.eq.s32.totalorder %s17, 0
    %p143 = por %p141, %p142
    %p144 = scmp.ne.s32.totalorder %s132, %s133
    %p145 = scmp.eq.s32.totalorder %s18, 1
    %p146 = por %p144, %p145
    %p148 = scmp.ne.s32.totalorder %s133, %s147
    %p149 = scmp.eq.s32.totalorder %s18, 0
    %p150 = por %p148, %p149
    %s151 = ssub.s32 %s12, %s19
    %p152 = scmp.eq.s32.totalorder %s151, 0
    %s154 = sadd.s32 %s153, 1
    %s155 = scalar_select %p152, %s153, %s154
    %p158 = pneg %p152
    %p159 = scmp.eq.s32.totalorder %s12, 1
    %p160 = por %p158, %p159
    %p161 = scmp.ne.s32.totalorder %s153, %s156
    %p162 = scmp.eq.s32.totalorder %s12, 0
    %p163 = por %p161, %p162
    %p164 = scmp.ne.s32.totalorder %s153, %s156
    %p165 = scmp.eq.s32.totalorder %s17, 1
    %p166 = por %p164, %p165
    %p167 = scmp.ne.s32.totalorder %s156, %s157
    %p168 = scmp.eq.s32.totalorder %s17, 0
    %p169 = por %p167, %p168
    %p170 = scmp.ne.s32.totalorder %s156, %s157
    %p171 = scmp.eq.s32.totalorder %s18, 1
    %p172 = por %p170, %p171
    %p174 = scmp.ne.s32.totalorder %s157, %s173
    %p175 = scmp.eq.s32.totalorder %s18, 0
    %p176 = por %p174, %p175
    %p177 = scmp.le.s32.totalorder 1, %s12
    %p178 = scmp.lt.s32.totalorder %s12, 3
    %p179 = pnand %p177, %p178
    %p180 = pneg %p179
    // Predicated region
    $region9: #{tpu_custom_call.1} parent=5 // pred_check
      _
    $region10: #{tpu_custom_call.1} parent=5 // pred_check_branch
      %182 = sbr.rel (%p179) target = $region12
    $region11: #{tpu_custom_call.1} parent=5 // pred_region
      %s183 = ssub.s32 %s12, 1
      // Predicated region
      $region13: #{tpu_custom_call.1} parent=11 // pred_check
        %p184 = pneg %p59
      $region14: #{tpu_custom_call.1} parent=11 // pred_check_branch
        %186 = sbr.rel (%p184) target = $region16
      $region15: #{tpu_custom_call.1} parent=11 // pred_region
        _
      $region16: #{tpu_custom_call.1} parent=11 // pred_fallthru
        _
      // Predicated region
      $region17: #{tpu_custom_call.1} parent=11 // pred_check
        %p187 = pneg %p80
      $region18: #{tpu_custom_call.1} parent=11 // pred_check_branch
        %189 = sbr.rel (%p187) target = $region20
      $region19: #{tpu_custom_call.1} parent=11 // pred_region
        _
      $region20: #{tpu_custom_call.1} parent=11 // pred_fallthru
        _
      // Predicated region
      $region21: #{tpu_custom_call.1} parent=11 // pred_check
        %p190 = pneg %p101
      $region22: #{tpu_custom_call.1} parent=11 // pred_check_branch
        %192 = sbr.rel (%p190) target = $region24
      $region23: #{tpu_custom_call.1} parent=11 // pred_region
        _
      $region24: #{tpu_custom_call.1} parent=11 // pred_fallthru
        _
      // Predicated region
      $region25: #{tpu_custom_call.1} parent=11 // pred_check
        %p193 = pneg %p122
      $region26: #{tpu_custom_call.1} parent=11 // pred_check_branch
        %195 = sbr.rel (%p193) target = $region28
      $region27: #{tpu_custom_call.1} parent=11 // pred_region
        _
      $region28: #{tpu_custom_call.1} parent=11 // pred_fallthru
        _
      // Predicated region
      $region29: #{tpu_custom_call.1} parent=11 // pred_check
        %p196 = pneg %p143
      $region30: #{tpu_custom_call.1} parent=11 // pred_check_branch
        %198 = sbr.rel (%p196) target = $region32
      $region31: #{tpu_custom_call.1} parent=11 // pred_region
        _
      $region32: #{tpu_custom_call.1} parent=11 // pred_fallthru
        _
    $region12: #{tpu_custom_call.1} parent=5 // pred_fallthru
      _
    %p199 = scmp.lt.s32.totalorder %s12, 2
    // Predicated region
    $region33: #{tpu_custom_call.1} parent=5 // pred_check
      %p200 = pneg %p199
    $region34: #{tpu_custom_call.1} parent=5 // pred_check_branch
      %202 = sbr.rel (%p200) target = $region36
    $region35: #{tpu_custom_call.1} parent=5 // pred_region
      // Predicated region
      $region37: #{tpu_custom_call.1} parent=35 // pred_check
        %p203 = pneg %p32
      $region38: #{tpu_custom_call.1} parent=35 // pred_check_branch
        %205 = sbr.rel (%p203) target = $region40
      $region39: #{tpu_custom_call.1} parent=35 // pred_region
        %p206 = scmp.lt.s32.totalorder %s12, 1
        %s207 = scalar_select %p206, %s12, 1
        %s208 = smul.addr %s207, 41
        %s209 = smul.addr %s208, 8
        %s210 = scalar_lea.vmem %s0, %s209
      $region40: #{tpu_custom_call.1} parent=35 // pred_fallthru
        _
    $region36: #{tpu_custom_call.1} parent=5 // pred_fallthru
      _
    %p211 = scmp.le.s32.totalorder 1, %s12
    %p212 = scmp.lt.s32.totalorder %s12, 3
    %p213 = pnand %p211, %p212
    %p214 = pneg %p213
    // Predicated region
    $region41: #{tpu_custom_call.1} parent=5 // pred_check
      _
    $region42: #{tpu_custom_call.1} parent=5 // pred_check_branch
      %216 = sbr.rel (%p213) target = $region44
    $region43: #{tpu_custom_call.1} parent=5 // pred_region
      %s217 = ssub.s32 %s12, 1
      %p218 = scmp.lt.s32.totalorder %s17, 1
      %s219 = scalar_select %p218, %s17, 1
      %s220 = smul.addr %s219, 41
      %s221 = smul.addr %s220, 8
      %s222 = scalar_lea.vmem %s0, %s221
      %p223 = pneg %p38
      %p224 = pneg %p35
      %p225 = pneg %p59
      %p226 = pneg %p56
      %p227 = pneg %p80
      %p228 = pneg %p77
      %p229 = pneg %p101
      %p230 = pneg %p98
      %p231 = pneg %p122
      %p232 = pneg %p119
      %p233 = pneg %p143
      %p234 = pneg %p140
      %p235 = pneg %p169
      %p236 = pneg %p166
      %p237 = scmp.lt.s32.totalorder %s17, 1
      %s238 = scalar_select %p237, %s17, 1
      %s239 = scalar_lea.vmem %s6, %s238
      %p240 = scmp.lt.s32.totalorder %s17, 1
      %s241 = scalar_select %p240, %s17, 1
      %s242 = smul.addr %s241, 41
      %s243 = smul.addr %s242, 8
      %s244 = scalar_lea.vmem %s0, %s243
      %p245 = scmp.lt.s32.totalorder %s17, 1
      %s246 = scalar_select %p245, %s17, 1
      %s247 = scalar_lea.vmem %s6, %s246
      %v249 = vld [vmem:[%s244] ss:$2 sm:$0xff]
      %s250 = scalar_lea.vmem %s244, 36
      %v251 = vld [vmem:[%s250] ss:$2 sm:$0xff]
      %s252 = scalar_lea.vmem %s244, 72
      %v253 = vld [vmem:[%s252] ss:$2 sm:$0xff]
      %s254 = scalar_lea.vmem %s244, 108
      %v255 = vld [vmem:[%s254] ss:$2 sm:$0xff]
      %s256 = scalar_lea.vmem %s244, 144
      %v257 = vld [vmem:[%s256] ss:$2 sm:$0xff]
      %s258 = scalar_lea.vmem %s244, 180
      %v259 = vld [vmem:[%s258] ss:$2 sm:$0xff]
      %s260 = scalar_lea.vmem %s244, 216
      %v261 = vld [vmem:[%s260] ss:$2 sm:$0xff]
      %s262 = scalar_lea.vmem %s244, 252
      %v263 = vld [vmem:[%s262] ss:$2 sm:$0xff]
      %s264 = scalar_lea.vmem %s244, 1
      %v265 = vld [vmem:[%s264] ss:$2 sm:$0xff]
      %s266 = scalar_lea.vmem %s244, 37
      %v267 = vld [vmem:[%s266] ss:$2 sm:$0xff]
      %s268 = scalar_lea.vmem %s244, 73
      %v269 = vld [vmem:[%s268] ss:$2 sm:$0xff]
      %s270 = scalar_lea.vmem %s244, 109
      %v271 = vld [vmem:[%s270] ss:$2 sm:$0xff]
      %s272 = scalar_lea.vmem %s244, 145
      %v273 = vld [vmem:[%s272] ss:$2 sm:$0xff]
      %s274 = scalar_lea.vmem %s244, 181
      %v275 = vld [vmem:[%s274] ss:$2 sm:$0xff]
      %s276 = scalar_lea.vmem %s244, 217
      %v277 = vld [vmem:[%s276] ss:$2 sm:$0xff]
      %s278 = scalar_lea.vmem %s244, 253
      %v279 = vld [vmem:[%s278] ss:$2 sm:$0xff]
      %s280 = scalar_lea.vmem %s244, 2
      %v281 = vld [vmem:[%s280] ss:$2 sm:$0xff]
      %s282 = scalar_lea.vmem %s244, 38
      %v283 = vld [vmem:[%s282] ss:$2 sm:$0xff]
      %s284 = scalar_lea.vmem %s244, 74
      %v285 = vld [vmem:[%s284] ss:$2 sm:$0xff]
      %s286 = scalar_lea.vmem %s244, 110
      %v287 = vld [vmem:[%s286] ss:$2 sm:$0xff]
      %s288 = scalar_lea.vmem %s244, 146
      %v289 = vld [vmem:[%s288] ss:$2 sm:$0xff]
      %s290 = scalar_lea.vmem %s244, 182
      %v291 = vld [vmem:[%s290] ss:$2 sm:$0xff]
      %s292 = scalar_lea.vmem %s244, 218
      %v293 = vld [vmem:[%s292] ss:$2 sm:$0xff]
      %s294 = scalar_lea.vmem %s244, 254
      %v295 = vld [vmem:[%s294] ss:$2 sm:$0xff]
      %s296 = scalar_lea.vmem %s244, 18
      %v297 = vld [vmem:[%s296] ss:$2 sm:$0xff]
      %s298 = scalar_lea.vmem %s244, 54
      %v299 = vld [vmem:[%s298] ss:$2 sm:$0xff]
      %s300 = scalar_lea.vmem %s244, 90
      %v301 = vld [vmem:[%s300] ss:$2 sm:$0xff]
      %s302 = scalar_lea.vmem %s244, 126
      %v303 = vld [vmem:[%s302] ss:$2 sm:$0xff]
      %s304 = scalar_lea.vmem %s244, 162
      %v305 = vld [vmem:[%s304] ss:$2 sm:$0xff]
      %s306 = scalar_lea.vmem %s244, 198
      %v307 = vld [vmem:[%s306] ss:$2 sm:$0xff]
      %s308 = scalar_lea.vmem %s244, 234
      %v309 = vld [vmem:[%s308] ss:$2 sm:$0xff]
      %s310 = scalar_lea.vmem %s244, 270
      %v311 = vld [vmem:[%s310] ss:$2 sm:$0xff]
      %s312 = scalar_lea.vmem %s244, 19
      %v313 = vld [vmem:[%s312] ss:$2 sm:$0xff]
      %s314 = scalar_lea.vmem %s244, 55
      %v315 = vld [vmem:[%s314] ss:$2 sm:$0xff]
      %s316 = scalar_lea.vmem %s244, 91
      %v317 = vld [vmem:[%s316] ss:$2 sm:$0xff]
      %s318 = scalar_lea.vmem %s244, 127
      %v319 = vld [vmem:[%s318] ss:$2 sm:$0xff]
      %s320 = scalar_lea.vmem %s244, 163
      %v321 = vld [vmem:[%s320] ss:$2 sm:$0xff]
      %s322 = scalar_lea.vmem %s244, 199
      %v323 = vld [vmem:[%s322] ss:$2 sm:$0xff]
      %s324 = scalar_lea.vmem %s244, 235
      %v325 = vld [vmem:[%s324] ss:$2 sm:$0xff]
      %s326 = scalar_lea.vmem %s244, 271
      %v327 = vld [vmem:[%s326] ss:$2 sm:$0xff]
      %s328 = scalar_lea.vmem %s244, 20
      %v329 = vld [vmem:[%s328] ss:$2 sm:$0xff]
      %s330 = scalar_lea.vmem %s244, 56
      %v331 = vld [vmem:[%s330] ss:$2 sm:$0xff]
      %s332 = scalar_lea.vmem %s244, 92
      %v333 = vld [vmem:[%s332] ss:$2 sm:$0xff]
      %s334 = scalar_lea.vmem %s244, 128
      %v335 = vld [vmem:[%s334] ss:$2 sm:$0xff]
      %s336 = scalar_lea.vmem %s244, 164
      %v337 = vld [vmem:[%s336] ss:$2 sm:$0xff]
      %s338 = scalar_lea.vmem %s244, 200
      %v339 = vld [vmem:[%s338] ss:$2 sm:$0xff]
      %s340 = scalar_lea.vmem %s244, 236
      %v341 = vld [vmem:[%s340] ss:$2 sm:$0xff]
      %s342 = scalar_lea.vmem %s244, 272
      %v343 = vld [vmem:[%s342] ss:$2 sm:$0xff]
      %s344 = scalar_lea.vmem %s244, 288
      %v345 = vld [vmem:[%s344] ss:$2 sm:$0xff]
      %s346 = scalar_lea.vmem %s244, 289
      %v347 = vld [vmem:[%s346] ss:$2 sm:$0xff]
      %s348 = scalar_lea.vmem %s244, 290
      %v349 = vld [vmem:[%s348] ss:$2 sm:$0xff]
      %358 = vrot.lane.b32.xlu0 %v265, 4
      %v359 = vpop.permute.xlu0 %358
      %360 = vrot.lane.b32.xlu0 %v267, 4
      %v361 = vpop.permute.xlu0 %360
      %362 = vrot.lane.b32.xlu0 %v269, 4
      %v363 = vpop.permute.xlu0 %362
      %364 = vrot.lane.b32.xlu0 %v271, 4
      %v365 = vpop.permute.xlu0 %364
      %366 = vrot.lane.b32.xlu0 %v273, 4
      %v367 = vpop.permute.xlu0 %366
      %368 = vrot.lane.b32.xlu0 %v275, 4
      %v369 = vpop.permute.xlu0 %368
      %370 = vrot.lane.b32.xlu0 %v277, 4
      %v371 = vpop.permute.xlu0 %370
      %372 = vrot.lane.b32.xlu0 %v279, 4
      %v373 = vpop.permute.xlu0 %372
      %390 = vrot.lane.b32.xlu0 %v281, 8
      %v391 = vpop.permute.xlu0 %390
      %392 = vrot.lane.b32.xlu0 %v283, 8
      %v393 = vpop.permute.xlu0 %392
      %394 = vrot.lane.b32.xlu0 %v285, 8
      %v395 = vpop.permute.xlu0 %394
      %396 = vrot.lane.b32.xlu0 %v287, 8
      %v397 = vpop.permute.xlu0 %396
      %398 = vrot.lane.b32.xlu0 %v289, 8
      %v399 = vpop.permute.xlu0 %398
      %400 = vrot.lane.b32.xlu0 %v291, 8
      %v401 = vpop.permute.xlu0 %400
      %402 = vrot.lane.b32.xlu0 %v293, 8
      %v403 = vpop.permute.xlu0 %402
      %404 = vrot.lane.b32.xlu0 %v295, 8
      %v405 = vpop.permute.xlu0 %404
      %422 = vrot.lane.b32.xlu0 %v297, 12
      %v423 = vpop.permute.xlu0 %422
      %424 = vrot.lane.b32.xlu0 %v299, 12
      %v425 = vpop.permute.xlu0 %424
      %426 = vrot.lane.b32.xlu0 %v301, 12
      %v427 = vpop.permute.xlu0 %426
      %428 = vrot.lane.b32.xlu0 %v303, 12
      %v429 = vpop.permute.xlu0 %428
      %430 = vrot.lane.b32.xlu0 %v305, 12
      %v431 = vpop.permute.xlu0 %430
      %432 = vrot.lane.b32.xlu0 %v307, 12
      %v433 = vpop.permute.xlu0 %432
      %434 = vrot.lane.b32.xlu0 %v309, 12
      %v435 = vpop.permute.xlu0 %434
      %436 = vrot.lane.b32.xlu0 %v311, 12
      %v437 = vpop.permute.xlu0 %436
      %454 = vrot.lane.b32.xlu0 %v313, 16
      %v455 = vpop.permute.xlu0 %454
      %456 = vrot.lane.b32.xlu0 %v315, 16
      %v457 = vpop.permute.xlu0 %456
      %458 = vrot.lane.b32.xlu0 %v317, 16
      %v459 = vpop.permute.xlu0 %458
      %460 = vrot.lane.b32.xlu0 %v319, 16
      %v461 = vpop.permute.xlu0 %460
      %462 = vrot.lane.b32.xlu0 %v321, 16
      %v463 = vpop.permute.xlu0 %462
      %464 = vrot.lane.b32.xlu0 %v323, 16
      %v465 = vpop.permute.xlu0 %464
      %466 = vrot.lane.b32.xlu0 %v325, 16
      %v467 = vpop.permute.xlu0 %466
      %468 = vrot.lane.b32.xlu0 %v327, 16
      %v469 = vpop.permute.xlu0 %468
      %486 = vrot.lane.b32.xlu0 %v329, 20
      %v487 = vpop.permute.xlu0 %486
      %488 = vrot.lane.b32.xlu0 %v331, 20
      %v489 = vpop.permute.xlu0 %488
      %490 = vrot.lane.b32.xlu0 %v333, 20
      %v491 = vpop.permute.xlu0 %490
      %492 = vrot.lane.b32.xlu0 %v335, 20
      %v493 = vpop.permute.xlu0 %492
      %494 = vrot.lane.b32.xlu0 %v337, 20
      %v495 = vpop.permute.xlu0 %494
      %496 = vrot.lane.b32.xlu0 %v339, 20
      %v497 = vpop.permute.xlu0 %496
      %498 = vrot.lane.b32.xlu0 %v341, 20
      %v499 = vpop.permute.xlu0 %498
      %500 = vrot.lane.b32.xlu0 %v343, 20
      %v501 = vpop.permute.xlu0 %500
      %518 = vrot.lane.b32.xlu0 %v251, 24
      %v519 = vpop.permute.xlu0 %518
      %520 = vrot.lane.b32.xlu0 %v253, 24
      %v521 = vpop.permute.xlu0 %520
      %522 = vrot.lane.b32.xlu0 %v255, 24
      %v523 = vpop.permute.xlu0 %522
      %524 = vrot.lane.b32.xlu0 %v257, 24
      %v525 = vpop.permute.xlu0 %524
      %526 = vrot.lane.b32.xlu0 %v259, 24
      %v527 = vpop.permute.xlu0 %526
      %528 = vrot.lane.b32.xlu0 %v261, 24
      %v529 = vpop.permute.xlu0 %528
      %530 = vrot.lane.b32.xlu0 %v263, 24
      %v531 = vpop.permute.xlu0 %530
      %532 = vrot.lane.b32.xlu0 %v345, 24
      %v533 = vpop.permute.xlu0 %532
      %543 = vrot.lane.b32.xlu0 %v267, 28
      %v544 = vpop.permute.xlu0 %543
      %545 = vrot.lane.b32.xlu0 %v269, 28
      %v546 = vpop.permute.xlu0 %545
      %547 = vrot.lane.b32.xlu0 %v271, 28
      %v548 = vpop.permute.xlu0 %547
      %549 = vrot.lane.b32.xlu0 %v273, 28
      %v550 = vpop.permute.xlu0 %549
      %551 = vrot.lane.b32.xlu0 %v275, 28
      %v552 = vpop.permute.xlu0 %551
      %553 = vrot.lane.b32.xlu0 %v277, 28
      %v554 = vpop.permute.xlu0 %553
      %555 = vrot.lane.b32.xlu0 %v279, 28
      %v556 = vpop.permute.xlu0 %555
      %557 = vrot.lane.b32.xlu0 %v347, 28
      %v558 = vpop.permute.xlu0 %557
      %568 = vrot.lane.b32.xlu0 %v283, 32
      %v569 = vpop.permute.xlu0 %568
      %570 = vrot.lane.b32.xlu0 %v285, 32
      %v571 = vpop.permute.xlu0 %570
      %572 = vrot.lane.b32.xlu0 %v287, 32
      %v573 = vpop.permute.xlu0 %572
      %574 = vrot.lane.b32.xlu0 %v289, 32
      %v575 = vpop.permute.xlu0 %574
      %576 = vrot.lane.b32.xlu0 %v291, 32
      %v577 = vpop.permute.xlu0 %576
      %578 = vrot.lane.b32.xlu0 %v293, 32
      %v579 = vpop.permute.xlu0 %578
      %580 = vrot.lane.b32.xlu0 %v295, 32
      %v581 = vpop.permute.xlu0 %580
      %582 = vrot.lane.b32.xlu0 %v349, 32
      %v583 = vpop.permute.xlu0 %582
      %vm592 = vcmask 31744
      %v593 = vsel %vm592, %v249, %v359
      %v594 = vsel %vm592, %v251, %v361
      %v595 = vsel %vm592, %v253, %v363
      %v596 = vsel %vm592, %v255, %v365
      %v597 = vsel %vm592, %v257, %v367
      %v598 = vsel %vm592, %v259, %v369
      %v599 = vsel %vm592, %v261, %v371
      %v600 = vsel %vm592, %v263, %v373
      %vm601 = vcmask 64512
      %v602 = vsel %vm601, %v593, %v391
      %v603 = vsel %vm601, %v594, %v393
      %v604 = vsel %vm601, %v595, %v395
      %v605 = vsel %vm601, %v596, %v397
      %v606 = vsel %vm601, %v597, %v399
      %v607 = vsel %vm601, %v598, %v401
      %v608 = vsel %vm601, %v599, %v403
      %v609 = vsel %vm601, %v600, %v405
      %vm610 = vcmask 97280
      %v611 = vsel %vm610, %v602, %v423
      %v612 = vsel %vm610, %v603, %v425
      %v613 = vsel %vm610, %v604, %v427
      %v614 = vsel %vm610, %v605, %v429
      %v615 = vsel %vm610, %v606, %v431
      %v616 = vsel %vm610, %v607, %v433
      %v617 = vsel %vm610, %v608, %v435
      %v618 = vsel %vm610, %v609, %v437
      %vm619 = vcmask 130048
      %v620 = vsel %vm619, %v611, %v455
      %v621 = vsel %vm619, %v612, %v457
      %v622 = vsel %vm619, %v613, %v459
      %v623 = vsel %vm619, %v614, %v461
      %v624 = vsel %vm619, %v615, %v463
      %v625 = vsel %vm619, %v616, %v465
      %v626 = vsel %vm619, %v617, %v467
      %v627 = vsel %vm619, %v618, %v469
      %vm628 = vcmask 162816
      %v629 = vsel %vm628, %v620, %v487
      %v630 = vsel %vm628, %v621, %v489
      %v631 = vsel %vm628, %v622, %v491
      %v632 = vsel %vm628, %v623, %v493
      %v633 = vsel %vm628, %v624, %v495
      %v634 = vsel %vm628, %v625, %v497
      %v635 = vsel %vm628, %v626, %v499
      %v636 = vsel %vm628, %v627, %v501
      %vm637 = vcmask 195584
      %v638 = vsel %vm637, %v629, %v519
      %v639 = vsel %vm637, %v630, %v521
      %v640 = vsel %vm637, %v631, %v523
      %v641 = vsel %vm637, %v632, %v525
      %v642 = vsel %vm637, %v633, %v527
      %v643 = vsel %vm637, %v634, %v529
      %v644 = vsel %vm637, %v635, %v531
      %v645 = vsel %vm637, %v636, %v533
      %vm646 = vcmask 228352
      %v647 = vsel %vm646, %v638, %v544
      %v648 = vsel %vm646, %v639, %v546
      %v649 = vsel %vm646, %v640, %v548
      %v650 = vsel %vm646, %v641, %v550
      %v651 = vsel %vm646, %v642, %v552
      %v652 = vsel %vm646, %v643, %v554
      %v653 = vsel %vm646, %v644, %v556
      %v654 = vsel %vm646, %v645, %v558
      %vm655 = vcmask 261120
      %v656 = vsel %vm655, %v647, %v569
      %v657 = vsel %vm655, %v648, %v571
      %v658 = vsel %vm655, %v649, %v573
      %v659 = vsel %vm655, %v650, %v575
      %v660 = vsel %vm655, %v651, %v577
      %v661 = vsel %vm655, %v652, %v579
      %v662 = vsel %vm655, %v653, %v581
      %v663 = vsel %vm655, %v654, %v583
      %v664 = vpack.c.bf16 %v657, %v656
      %v665 = vpack.c.bf16 %v659, %v658
      %v666 = vpack.c.bf16 %v661, %v660
      %v667 = vpack.c.bf16 %v663, %v662
      %v668 = vld [vmem:[%s1] sm:$0xf]
      %v669 = vld [vmem:[%s1 + $0x4] sm:$0xf]
      %v670 = vld [vmem:[%s1 + $0x8] sm:$0xf]
      %v671 = vld [vmem:[%s1 + $0xc] sm:$0xf]
      %v672 = vld [vmem:[%s1 + $0x10] sm:$0x3]
      %v673 = vld [vmem:[%s5] sm:$0x1]
      %v674 = vld [vmem:[%s5 + $0x1] sm:$0x1]
      %v675 = vld [vmem:[%s5 + $0x2] sm:$0x1]
      %v676 = vlaneseq
      %v677 = vshrl.u32 %v676, 7
      %v678 = vsub.s32 0, %v677
      %v679 = vrot.slane %v673, %v678
      %v685 = vunpack.c.l.b16 %v668
      %v686 = vunpack.c.l.b16 %v669
      %v687 = vunpack.c.l.b16 %v670
      %v688 = vunpack.c.l.b16 %v671
      %v689 = vunpack.c.l.b16 %v672
      %v690 = vpack.c.b16 %v686, %v685
      %v691 = vpack.c.b16 %v688, %v687
      %v692 = vpack.c.b16 %v689, %v689
      %vm695 = vcmask 293888
      %v697 = vsel %vm695, %v664, 0
      %v700 = vsel %vm695, %v665, 0
      %v703 = vsel %vm695, %v666, 0
      %v706 = vsel %vm695, %v667, 0
      %vm708 = vcmask 1041408
      %v710 = vsel %vm708, %v692, 0
      %712 = vmatprep.subr.bf16.mxu0 0
      %713 = vmatpush1.bf16.msra.mxu0 %v690
      %714 = vmatprep.subr.bf16.mxu0 0
      %715 = vmatpush1.bf16.msra.mxu0 %v691
      %716 = vmatprep.subr.bf16.mxu0 0
      %717 = vmatpush1.bf16.msra.mxu0 %v710
      %718 = vmatprep.subr.bf16.mxu0 0
      %719 = vmatpush1.bf16.msra.mxu0 0
      %720 = vmatprep.subr.bf16.mxu0 0
      %721 = vmatpush1.bf16.msra.mxu0 0
      %722 = vmatprep.subr.bf16.mxu0 0
      %723 = vmatpush1.bf16.msra.mxu0 0
      %724 = vmatprep.subr.bf16.mxu0 0
      %725 = vmatpush1.bf16.msra.mxu0 0
      %726 = vmatprep.subr.bf16.mxu0 0
      %727 = vmatpush1.bf16.msra.mxu0 0
      %728 = vmatprep.subr.bf16.mxu0 0
      %729 = vmatpush1.bf16.msra.mxu0 0
      %730 = vmatprep.subr.bf16.mxu0 0
      %731 = vmatpush1.bf16.msra.mxu0 0
      %732 = vmatprep.subr.bf16.mxu0 0
      %733 = vmatpush1.bf16.msra.mxu0 0
      %734 = vmatprep.subr.bf16.mxu0 0
      %735 = vmatpush1.bf16.msra.mxu0 0
      %736 = vmatprep.subr.bf16.mxu0 0
      %737 = vmatpush1.bf16.msra.mxu0 0
      %738 = vmatprep.subr.bf16.mxu0 0
      %739 = vmatpush1.bf16.msra.mxu0 0
      %740 = vmatprep.subr.bf16.mxu0 0
      %741 = vmatpush1.bf16.msra.mxu0 0
      %742 = vmatprep.subr.bf16.mxu0 0
      %743 = vmatpush1.bf16.msra.mxu0 0
      %744 = vmatprep.mubr.bf16.mxu0 0
      %745 = vmatmul.mubr.bf16.gmra.mrb[0].mxu0 %v697
      %v746 = vpop.f32.mrb[0].mxu0
      %v747 = vadd.f32 %v679, %v746
      %v748 = vpop.f32.mrb[0].mxu0
      %v749 = vpop.f32.mrb[0].mxu0
      %v750 = vadd.f32 %v679, %v749
      %v751 = vpop.f32.mrb[0].mxu0
      %752 = vmatprep.mubr.bf16.mxu0 0
      %753 = vmatmul.mubr.bf16.gmra.mrb[0].mxu0 %v700
      %v754 = vpop.f32.mrb[0].mxu0
      %v755 = vadd.f32 %v679, %v754
      %v756 = vpop.f32.mrb[0].mxu0
      %v757 = vpop.f32.mrb[0].mxu0
      %v758 = vadd.f32 %v679, %v757
      %v759 = vpop.f32.mrb[0].mxu0
      %760 = vmatprep.mubr.bf16.mxu0 0
      %761 = vmatmul.mubr.bf16.gmra.mrb[0].mxu0 %v703
      %v762 = vpop.f32.mrb[0].mxu0
      %v763 = vadd.f32 %v679, %v762
      %v764 = vpop.f32.mrb[0].mxu0
      %v765 = vpop.f32.mrb[0].mxu0
      %v766 = vadd.f32 %v679, %v765
      %v767 = vpop.f32.mrb[0].mxu0
      %768 = vmatprep.mubr.bf16.mxu0 0
      %769 = vmatmul.mubr.bf16.gmra.mrb[0].mxu0 %v706
      %v770 = vpop.f32.mrb[0].mxu0
      %v771 = vadd.f32 %v679, %v770
      %v772 = vpop.f32.mrb[0].mxu0
      %v773 = vpop.f32.mrb[0].mxu0
      %v774 = vadd.f32 %v679, %v773
      %v775 = vpop.f32.mrb[0].mxu0
      %776 = vdwg.mxu0
      %vm777 = vcmp.ge.f32.partialorder %v747, 0.0
      %vm778 = vcmp.ge.f32.partialorder %v750, 0.0
      %vm779 = vcmp.ge.f32.partialorder %v755, 0.0
      %vm780 = vcmp.ge.f32.partialorder %v758, 0.0
      %vm781 = vcmp.ge.f32.partialorder %v763, 0.0
      %vm782 = vcmp.ge.f32.partialorder %v766, 0.0
      %vm783 = vcmp.ge.f32.partialorder %v771, 0.0
      %vm784 = vcmp.ge.f32.partialorder %v774, 0.0
      %v785 = vmul.f32 %v747, 0.2
      %v786 = vmul.f32 %v750, 0.2
      %v787 = vmul.f32 %v755, 0.2
      %v788 = vmul.f32 %v758, 0.2
      %v789 = vmul.f32 %v763, 0.2
      %v790 = vmul.f32 %v766, 0.2
      %v791 = vmul.f32 %v771, 0.2
      %v792 = vmul.f32 %v774, 0.2
      %v793 = vsel %vm777, %v747, %v785
      %v794 = vsel %vm778, %v750, %v786
      %v795 = vsel %vm779, %v755, %v787
      %v796 = vsel %vm780, %v758, %v788
      %v797 = vsel %vm781, %v763, %v789
      %v798 = vsel %vm782, %v766, %v790
      %v799 = vsel %vm783, %v771, %v791
      %v800 = vsel %vm784, %v774, %v792
      %v801 = vlaneseq
      %v802 = vshrl.u32 %v801, 7
      %v803 = vsub.s32 0, %v802
      %v804 = vrot.slane %v674, %v803
      %v805 = vmul.f32 %v793, %v804
      %v806 = vmul.f32 %v794, %v804
      %v807 = vmul.f32 %v795, %v804
      %v808 = vmul.f32 %v796, %v804
      %v809 = vmul.f32 %v797, %v804
      %v810 = vmul.f32 %v798, %v804
      %v811 = vmul.f32 %v799, %v804
      %v812 = vmul.f32 %v800, %v804
      %v813 = vlaneseq
      %v814 = vshrl.u32 %v813, 7
      %v815 = vsub.s32 0, %v814
      %v816 = vrot.slane %v675, %v815
      %v817 = vadd.f32 %v805, %v816
      %v818 = vadd.f32 %v806, %v816
      %v819 = vadd.f32 %v807, %v816
      %v820 = vadd.f32 %v808, %v816
      %v821 = vadd.f32 %v809, %v816
      %v822 = vadd.f32 %v810, %v816
      %v823 = vadd.f32 %v811, %v816
      %v824 = vadd.f32 %v812, %v816
      %825 = vst.msk [vmem:[#allocation2] sm:$0xff] %vm619, 0.0
      %826 = vst.msk [vmem:[#allocation2 + $0x8] sm:$0xff] %vm619, 0.0
      %827 = vst.msk [vmem:[#allocation2 + $0x10] sm:$0xff] %vm619, 0.0
      %828 = vst.msk [vmem:[#allocation2 + $0x18] sm:$0xff] %vm619, 0.0
      %829 = vst.msk [vmem:[#allocation2 + $0x20] sm:$0xff] %vm619, 0.0
      %830 = vst.msk [vmem:[#allocation2 + $0x28] sm:$0xff] %vm619, 0.0
      %831 = vst.msk [vmem:[#allocation2 + $0x30] sm:$0xff] %vm619, 0.0
      %832 = vst.msk [vmem:[#allocation2 + $0x38] sm:$0xff] %vm619, 0.0
      %833 = vst.msk [vmem:[#allocation2 + $0x40] sm:$0xff] %vm619, 0.0
      %834 = vst.msk [vmem:[#allocation2 + $0x48] sm:$0xff] %vm619, 0.0
      %835 = vst.msk [vmem:[#allocation2 + $0x50] sm:$0xff] %vm619, 0.0
      %836 = vst.msk [vmem:[#allocation2 + $0x58] sm:$0xff] %vm619, 0.0
      %vm837 = vcmask 125952
      %838 = vst.msk [vmem:[#allocation2 + $0x60] sm:$0xf] %vm837, 0.0
      %839 = vst.msk [vmem:[#allocation2 + $0xb] sm:$0xff] %vm619, %v817
      %840 = vst.msk [vmem:[#allocation2 + $0x15] sm:$0xff] %vm619, %v818
      %841 = vst.msk [vmem:[#allocation2 + $0x1f] sm:$0xff] %vm619, %v819
      %842 = vst.msk [vmem:[#allocation2 + $0x29] sm:$0xff] %vm619, %v820
      %843 = vst.msk [vmem:[#allocation2 + $0x33] sm:$0xff] %vm619, %v821
      %844 = vst.msk [vmem:[#allocation2 + $0x3d] sm:$0xff] %vm619, %v822
      %845 = vst.msk [vmem:[#allocation2 + $0x47] sm:$0xff] %vm619, %v823
      %846 = vst.msk [vmem:[#allocation2 + $0x51] sm:$0xff] %vm619, %v824
      %v847 = vld [vmem:[#allocation2] ss:$2 sm:$0xf]
      %s848 = scalar_lea.vmem [#allocation2], 20
      %v849 = vld [vmem:[%s848] ss:$2 sm:$0xf]
      %s850 = scalar_lea.vmem [#allocation2], 40
      %v851 = vld [vmem:[%s850] ss:$2 sm:$0xf]
      %s852 = scalar_lea.vmem [#allocation2], 60
      %v853 = vld [vmem:[%s852] ss:$2 sm:$0xf]
      %v855 = vrot.slane %v849, 4
      %v858 = vrot.slane %v853, 4
      %vm860 = vcmask 1043456
      %v861 = vsel %vm860, %v847, %v855
      %v862 = vsel %vm860, %v851, %v858
      %s863 = scalar_lea.vmem [#allocation2], 1
      %v864 = vld [vmem:[%s863] ss:$2 sm:$0xf]
      %s865 = scalar_lea.vmem [#allocation2], 21
      %v866 = vld [vmem:[%s865] ss:$2 sm:$0xf]
      %s867 = scalar_lea.vmem [#allocation2], 41
      %v868 = vld [vmem:[%s867] ss:$2 sm:$0xf]
      %s869 = scalar_lea.vmem [#allocation2], 61
      %v870 = vld [vmem:[%s869] ss:$2 sm:$0xf]
      %v872 = vrot.slane %v866, 4
      %v875 = vrot.slane %v870, 4
      %v877 = vsel %vm860, %v864, %v872
      %v878 = vsel %vm860, %v868, %v875
      %s879 = scalar_lea.vmem [#allocation2], 2
      %v880 = vld [vmem:[%s879] ss:$2 sm:$0xf]
      %s881 = scalar_lea.vmem [#allocation2], 22
      %v882 = vld [vmem:[%s881] ss:$2 sm:$0xf]
      %s883 = scalar_lea.vmem [#allocation2], 42
      %v884 = vld [vmem:[%s883] ss:$2 sm:$0xf]
      %s885 = scalar_lea.vmem [#allocation2], 62
      %v886 = vld [vmem:[%s885] ss:$2 sm:$0xf]
      %v888 = vrot.slane %v882, 4
      %v891 = vrot.slane %v886, 4
      %v893 = vsel %vm860, %v880, %v888
      %v894 = vsel %vm860, %v884, %v891
      %s895 = scalar_lea.vmem [#allocation2], 10
      %v896 = vld [vmem:[%s895] ss:$2 sm:$0xf]
      %s897 = scalar_lea.vmem [#allocation2], 30
      %v898 = vld [vmem:[%s897] ss:$2 sm:$0xf]
      %s899 = scalar_lea.vmem [#allocation2], 50
      %v900 = vld [vmem:[%s899] ss:$2 sm:$0xf]
      %s901 = scalar_lea.vmem [#allocation2], 70
      %v902 = vld [vmem:[%s901] ss:$2 sm:$0xf]
      %v904 = vrot.slane %v898, 4
      %v907 = vrot.slane %v902, 4
      %v909 = vsel %vm860, %v896, %v904
      %v910 = vsel %vm860, %v900, %v907
      %s911 = scalar_lea.vmem [#allocation2], 11
      %v912 = vld [vmem:[%s911] ss:$2 sm:$0xf]
      %s913 = scalar_lea.vmem [#allocation2], 31
      %v914 = vld [vmem:[%s913] ss:$2 sm:$0xf]
      %s915 = scalar_lea.vmem [#allocation2], 51
      %v916 = vld [vmem:[%s915] ss:$2 sm:$0xf]
      %s917 = scalar_lea.vmem [#allocation2], 71
      %v918 = vld [vmem:[%s917] ss:$2 sm:$0xf]
      %v920 = vrot.slane %v914, 4
      %v923 = vrot.slane %v918, 4
      %v925 = vsel %vm860, %v912, %v920
      %v926 = vsel %vm860, %v916, %v923
      %s927 = scalar_lea.vmem [#allocation2], 12
      %v928 = vld [vmem:[%s927] ss:$2 sm:$0xf]
      %s929 = scalar_lea.vmem [#allocation2], 32
      %v930 = vld [vmem:[%s929] ss:$2 sm:$0xf]
      %s931 = scalar_lea.vmem [#allocation2], 52
      %v932 = vld [vmem:[%s931] ss:$2 sm:$0xf]
      %s933 = scalar_lea.vmem [#allocation2], 72
      %v934 = vld [vmem:[%s933] ss:$2 sm:$0xf]
      %v936 = vrot.slane %v930, 4
      %v939 = vrot.slane %v934, 4
      %v941 = vsel %vm860, %v928, %v936
      %v942 = vsel %vm860, %v932, %v939
      %s943 = scalar_lea.vmem [#allocation2], 80
      %v944 = vld [vmem:[%s943] ss:$2 sm:$0xf]
      %v946 = vrot.slane %v851, 4
      %v949 = vrot.slane %v944, 4
      %v951 = vsel %vm860, %v849, %v946
      %v952 = vsel %vm860, %v853, %v949
      %s953 = scalar_lea.vmem [#allocation2], 81
      %v954 = vld [vmem:[%s953] ss:$2 sm:$0xf]
      %v956 = vrot.slane %v868, 4
      %v959 = vrot.slane %v954, 4
      %v961 = vsel %vm860, %v866, %v956
      %v962 = vsel %vm860, %v870, %v959
      %s963 = scalar_lea.vmem [#allocation2], 82
      %v964 = vld [vmem:[%s963] ss:$2 sm:$0xf]
      %v966 = vrot.slane %v884, 4
      %v969 = vrot.slane %v964, 4
      %v971 = vsel %vm860, %v882, %v966
      %v972 = vsel %vm860, %v886, %v969
      %975 = vrot.lane.b32.xlu0 %v877, 16
      %v976 = vpop.permute.xlu0 %975
      %977 = vrot.lane.b32.xlu0 %v878, 16
      %v978 = vpop.permute.xlu0 %977
      %983 = vrot.lane.b32.xlu0 %v893, 32
      %v984 = vpop.permute.xlu0 %983
      %985 = vrot.lane.b32.xlu0 %v894, 32
      %v986 = vpop.permute.xlu0 %985
      %991 = vrot.lane.b32.xlu0 %v909, 48
      %v992 = vpop.permute.xlu0 %991
      %993 = vrot.lane.b32.xlu0 %v910, 48
      %v994 = vpop.permute.xlu0 %993
      %999 = vrot.lane.b32.xlu0 %v925, 64
      %v1000 = vpop.permute.xlu0 %999
      %1001 = vrot.lane.b32.xlu0 %v926, 64
      %v1002 = vpop.permute.xlu0 %1001
      %1007 = vrot.lane.b32.xlu0 %v941, 80
      %v1008 = vpop.permute.xlu0 %1007
      %1009 = vrot.lane.b32.xlu0 %v942, 80
      %v1010 = vpop.permute.xlu0 %1009
      %1015 = vrot.lane.b32.xlu0 %v951, 96
      %v1016 = vpop.permute.xlu0 %1015
      %1017 = vrot.lane.b32.xlu0 %v952, 96
      %v1018 = vpop.permute.xlu0 %1017
      %1023 = vrot.lane.b32.xlu0 %v961, 112
      %v1024 = vpop.permute.xlu0 %1023
      %1025 = vrot.lane.b32.xlu0 %v962, 112
      %v1026 = vpop.permute.xlu0 %1025
      %v1029 = vsel %vm619, %v861, %v976
      %v1030 = vsel %vm619, %v862, %v978
      %v1031 = vsel %vm655, %v1029, %v984
      %v1032 = vsel %vm655, %v1030, %v986
      %vm1033 = vcmask 392192
      %v1034 = vsel %vm1033, %v1031, %v992
      %v1035 = vsel %vm1033, %v1032, %v994
      %vm1036 = vcmask 523264
      %v1037 = vsel %vm1036, %v1034, %v1000
      %v1038 = vsel %vm1036, %v1035, %v1002
      %vm1039 = vcmask 654336
      %v1040 = vsel %vm1039, %v1037, %v1008
      %v1041 = vsel %vm1039, %v1038, %v1010
      %vm1042 = vcmask 785408
      %v1043 = vsel %vm1042, %v1040, %v1016
      %v1044 = vsel %vm1042, %v1041, %v1018
      %vm1045 = vcmask 916480
      %v1046 = vsel %vm1045, %v1043, %v1024
      %v1047 = vsel %vm1045, %v1044, %v1026
      %v1048 = vpack.c.bf16 %v1047, %v1046
      %v1049 = vpack.c.bf16 %v972, %v971
      %v1050 = vld [vmem:[%s2] sm:$0xf]
      %v1051 = vld [vmem:[%s2 + $0x4] sm:$0xf]
      %v1052 = vld [vmem:[%s2 + $0x8] sm:$0xf]
      %v1053 = vld [vmem:[%s2 + $0xc] sm:$0xf]
      %v1054 = vld [vmem:[%s2 + $0x10] sm:$0xf]
      %v1055 = vld [vmem:[%s2 + $0x14] sm:$0xf]
      %v1056 = vld [vmem:[%s2 + $0x18] sm:$0xf]
      %v1057 = vld [vmem:[%s2 + $0x1c] sm:$0xf]
      %v1058 = vld [vmem:[%s2 + $0x20] sm:$0xf]
      %v1059 = vld [vmem:[%s2 + $0x24] sm:$0xf]
      %v1060 = vld [vmem:[%s2 + $0x28] sm:$0xf]
      %v1061 = vld [vmem:[%s2 + $0x2c] sm:$0xf]
      %v1062 = vld [vmem:[%s2 + $0x30] sm:$0xf]
      %v1063 = vld [vmem:[%s2 + $0x34] sm:$0xf]
      %v1064 = vld [vmem:[%s2 + $0x38] sm:$0xf]
      %v1065 = vld [vmem:[%s2 + $0x3c] sm:$0xf]
      %v1066 = vld [vmem:[%s2 + $0x40] sm:$0xf]
      %v1067 = vld [vmem:[%s2 + $0x44] sm:$0xf]
      %v1068 = vld [vmem:[%s5 + $0x3] sm:$0x1]
      %v1069 = vld [vmem:[%s5 + $0x4] sm:$0x1]
      %v1070 = vld [vmem:[%s5 + $0x5] sm:$0x1]
      %v1071 = vlaneseq
      %v1072 = vshrl.u32 %v1071, 7
      %v1073 = vsub.s32 0, %v1072
      %v1074 = vrot.slane %v1068, %v1073
      %v1093 = vunpack.c.l.b16 %v1050
      %v1094 = vunpack.c.l.b16 %v1051
      %v1095 = vunpack.c.l.b16 %v1052
      %v1096 = vunpack.c.l.b16 %v1053
      %v1097 = vunpack.c.l.b16 %v1054
      %v1098 = vunpack.c.l.b16 %v1055
      %v1099 = vunpack.c.l.b16 %v1056
      %v1100 = vunpack.c.l.b16 %v1057
      %v1101 = vunpack.c.l.b16 %v1058
      %v1102 = vunpack.c.l.b16 %v1059
      %v1103 = vunpack.c.l.b16 %v1060
      %v1104 = vunpack.c.l.b16 %v1061
      %v1105 = vunpack.c.l.b16 %v1062
      %v1106 = vunpack.c.l.b16 %v1063
      %v1107 = vunpack.c.l.b16 %v1064
      %v1108 = vunpack.c.l.b16 %v1065
      %v1109 = vunpack.c.l.b16 %v1066
      %v1110 = vunpack.c.l.b16 %v1067
      %v1111 = vpack.c.b16 %v1094, %v1093
      %v1112 = vpack.c.b16 %v1096, %v1095
      %v1113 = vpack.c.b16 %v1098, %v1097
      %v1114 = vpack.c.b16 %v1100, %v1099
      %v1115 = vpack.c.b16 %v1102, %v1101
      %v1116 = vpack.c.b16 %v1104, %v1103
      %v1117 = vpack.c.b16 %v1106, %v1105
      %v1118 = vpack.c.b16 %v1108, %v1107
      %v1119 = vpack.c.b16 %v1110, %v1109
      %v1130 = vsel %vm619, %v1049, 0
      %1132 = vmatprep.subr.bf16.mxu0 0
      %1133 = vmatpush1.bf16.msra.mxu0 %v1111
      %1134 = vmatprep.subr.bf16.mxu0 0
      %1135 = vmatpush1.bf16.msra.mxu0 %v1112
      %1136 = vmatprep.subr.bf16.mxu0 0
      %1137 = vmatpush1.bf16.msra.mxu0 %v1113
      %1138 = vmatprep.subr.bf16.mxu0 0
      %1139 = vmatpush1.bf16.msra.mxu0 %v1114
      %1140 = vmatprep.subr.bf16.mxu0 0
      %1141 = vmatpush1.bf16.msra.mxu0 %v1115
      %1142 = vmatprep.subr.bf16.mxu0 0
      %1143 = vmatpush1.bf16.msra.mxu0 %v1116
      %1144 = vmatprep.subr.bf16.mxu0 0
      %1145 = vmatpush1.bf16.msra.mxu0 %v1117
      %1146 = vmatprep.subr.bf16.mxu0 0
      %1147 = vmatpush1.bf16.msra.mxu0 %v1118
      %1148 = vmatprep.subr.bf16.mxu0 0
      %1149 = vmatpush1.bf16.msra.mxu0 %v1119
      %1150 = vmatprep.subr.bf16.mxu0 0
      %1151 = vmatpush1.bf16.msra.mxu0 0
      %1152 = vmatprep.subr.bf16.mxu0 0
      %1153 = vmatpush1.bf16.msra.mxu0 0
      %1154 = vmatprep.subr.bf16.mxu0 0
      %1155 = vmatpush1.bf16.msra.mxu0 0
      %1156 = vmatprep.subr.bf16.mxu0 0
      %1157 = vmatpush1.bf16.msra.mxu0 0
      %1158 = vmatprep.subr.bf16.mxu0 0
      %1159 = vmatpush1.bf16.msra.mxu0 0
      %1160 = vmatprep.subr.bf16.mxu0 0
      %1161 = vmatpush1.bf16.msra.mxu0 0
      %1162 = vmatprep.subr.bf16.mxu0 0
      %1163 = vmatpush1.bf16.msra.mxu0 0
      %1164 = vmatprep.mubr.bf16.mxu0 %v1130
      %1165 = vmatmul.mubr.bf16.gmra.mrb[0].mxu0 %v1048
      %v1166 = vpop.f32.mrb[0].mxu0
      %v1167 = vadd.f32 %v1074, %v1166
      %v1168 = vpop.f32.mrb[0].mxu0
      %v1169 = vpop.f32.mrb[0].mxu0
      %v1170 = vadd.f32 %v1074, %v1169
      %v1171 = vpop.f32.mrb[0].mxu0
      %1172 = vdwg.mxu0
      %vm1173 = vcmp.ge.f32.partialorder %v1167, 0.0
      %vm1174 = vcmp.ge.f32.partialorder %v1170, 0.0
      %v1175 = vmul.f32 %v1167, 0.2
      %v1176 = vmul.f32 %v1170, 0.2
      %v1177 = vsel %vm1173, %v1167, %v1175
      %v1178 = vsel %vm1174, %v1170, %v1176
      %v1179 = vlaneseq
      %v1180 = vshrl.u32 %v1179, 7
      %v1181 = vsub.s32 0, %v1180
      %v1182 = vrot.slane %v1069, %v1181
      %v1183 = vmul.f32 %v1177, %v1182
      %v1184 = vmul.f32 %v1178, %v1182
      %v1185 = vlaneseq
      %v1186 = vshrl.u32 %v1185, 7
      %v1187 = vsub.s32 0, %v1186
      %v1188 = vrot.slane %v1070, %v1187
      %v1189 = vadd.f32 %v1183, %v1188
      %v1190 = vadd.f32 %v1184, %v1188
      %1191 = vst.msk [vmem:[#allocation3] sm:$0xff] %vm655, 0.0
      %1192 = vst.msk [vmem:[#allocation3 + $0x8] sm:$0xff] %vm655, 0.0
      %1193 = vst.msk [vmem:[#allocation3 + $0x10] sm:$0xff] %vm655, 0.0
      %1194 = vst.msk [vmem:[#allocation3 + $0x18] sm:$0xff] %vm655, 0.0
      %vm1195 = vcmask 257024
      %1196 = vst.msk [vmem:[#allocation3 + $0x20] sm:$0xf] %vm1195, 0.0
      %1197 = vst.msk [vmem:[#allocation3 + $0x7] sm:$0xf] %vm1195, %v1189
      %vm1198 = vcmask 261124
      %1199 = vst.msk [vmem:[#allocation3 + $0x9] sm:$0xf0] %vm1198, %v1189
      %1200 = vst.msk [vmem:[#allocation3 + $0x13] sm:$0xf] %vm1195, %v1190
      %1201 = vst.msk [vmem:[#allocation3 + $0x15] sm:$0xf0] %vm1198, %v1190
      %v1202 = vld [vmem:[#allocation3] ss:$2 sm:$0x3]
      %s1203 = scalar_lea.vmem [#allocation3], 12
      %v1204 = vld [vmem:[%s1203] ss:$2 sm:$0x3]
      %v1206 = vrot.slane %v1204, 6
      %v1208 = vsel %vm708, %v1202, %v1206
      %s1209 = scalar_lea.vmem [#allocation3], 1
      %v1210 = vld [vmem:[%s1209] ss:$2 sm:$0x3]
      %s1211 = scalar_lea.vmem [#allocation3], 13
      %v1212 = vld [vmem:[%s1211] ss:$2 sm:$0x3]
      %v1214 = vrot.slane %v1212, 6
      %v1216 = vsel %vm708, %v1210, %v1214
      %s1217 = scalar_lea.vmem [#allocation3], 2
      %v1218 = vld [vmem:[%s1217] ss:$2 sm:$0x3]
      %s1219 = scalar_lea.vmem [#allocation3], 14
      %v1220 = vld [vmem:[%s1219] ss:$2 sm:$0x3]
      %v1222 = vrot.slane %v1220, 6
      %v1224 = vsel %vm708, %v1218, %v1222
      %s1225 = scalar_lea.vmem [#allocation3], 6
      %v1226 = vld [vmem:[%s1225] ss:$2 sm:$0x3]
      %s1227 = scalar_lea.vmem [#allocation3], 18
      %v1228 = vld [vmem:[%s1227] ss:$2 sm:$0x3]
      %v1230 = vrot.slane %v1228, 6
      %v1232 = vsel %vm708, %v1226, %v1230
      %s1233 = scalar_lea.vmem [#allocation3], 7
      %v1234 = vld [vmem:[%s1233] ss:$2 sm:$0x3]
      %s1235 = scalar_lea.vmem [#allocation3], 19
      %v1236 = vld [vmem:[%s1235] ss:$2 sm:$0x3]
      %v1238 = vrot.slane %v1236, 6
      %v1240 = vsel %vm708, %v1234, %v1238
      %s1241 = scalar_lea.vmem [#allocation3], 8
      %v1242 = vld [vmem:[%s1241] ss:$2 sm:$0x3]
      %s1243 = scalar_lea.vmem [#allocation3], 20
      %v1244 = vld [vmem:[%s1243] ss:$2 sm:$0x3]
      %v1246 = vrot.slane %v1244, 6
      %v1248 = vsel %vm708, %v1242, %v1246
      %s1249 = scalar_lea.vmem [#allocation3], 24
      %v1250 = vld [vmem:[%s1249] ss:$2 sm:$0x3]
      %v1252 = vrot.slane %v1250, 6
      %v1254 = vsel %vm708, %v1204, %v1252
      %s1255 = scalar_lea.vmem [#allocation3], 25
      %v1256 = vld [vmem:[%s1255] ss:$2 sm:$0x3]
      %v1258 = vrot.slane %v1256, 6
      %v1260 = vsel %vm708, %v1212, %v1258
      %s1261 = scalar_lea.vmem [#allocation3], 26
      %v1262 = vld [vmem:[%s1261] ss:$2 sm:$0x3]
      %v1264 = vrot.slane %v1262, 6
      %v1266 = vsel %vm708, %v1220, %v1264
      %1268 = vrot.lane.b32.xlu0 %v1216, 32
      %v1269 = vpop.permute.xlu0 %1268
      %1272 = vrot.lane.b32.xlu0 %v1224, 64
      %v1273 = vpop.permute.xlu0 %1272
      %1276 = vrot.lane.b32.xlu0 %v1232, 96
      %v1277 = vpop.permute.xlu0 %1276
      %1280 = vrot.lane.b32.xlu0 %v1248, 32
      %v1281 = vpop.permute.xlu0 %1280
      %1284 = vrot.lane.b32.xlu0 %v1254, 64
      %v1285 = vpop.permute.xlu0 %1284
      %1288 = vrot.lane.b32.xlu0 %v1260, 96
      %v1289 = vpop.permute.xlu0 %1288
      %v1291 = vsel %vm655, %v1208, %v1269
      %v1292 = vsel %vm1036, %v1291, %v1273
      %v1293 = vsel %vm1042, %v1292, %v1277
      %v1294 = vsel %vm655, %v1240, %v1281
      %v1295 = vsel %vm1036, %v1294, %v1285
      %v1296 = vsel %vm1042, %v1295, %v1289
      %v1297 = vpack.c.bf16 %v1293, %v1293
      %v1298 = vpack.c.bf16 %v1296, %v1296
      %v1299 = vpack.c.bf16 %v1266, %v1266
      %v1300 = vld [vmem:[%s3] sm:$0xf]
      %v1301 = vld [vmem:[%s3 + $0x4] sm:$0xf]
      %v1302 = vld [vmem:[%s3 + $0x8] sm:$0xf]
      %v1303 = vld [vmem:[%s3 + $0xc] sm:$0xf]
      %v1304 = vld [vmem:[%s3 + $0x10] sm:$0xf]
      %v1305 = vld [vmem:[%s3 + $0x14] sm:$0xf]
      %v1306 = vld [vmem:[%s3 + $0x18] sm:$0xf]
      %v1307 = vld [vmem:[%s3 + $0x1c] sm:$0xf]
      %v1308 = vld [vmem:[%s3 + $0x20] sm:$0xf]
      %v1309 = vld [vmem:[%s3 + $0x24] sm:$0xf]
      %v1310 = vld [vmem:[%s3 + $0x28] sm:$0xf]
      %v1311 = vld [vmem:[%s3 + $0x2c] sm:$0xf]
      %v1312 = vld [vmem:[%s3 + $0x30] sm:$0xf]
      %v1313 = vld [vmem:[%s3 + $0x34] sm:$0xf]
      %v1314 = vld [vmem:[%s3 + $0x38] sm:$0xf]
      %v1315 = vld [vmem:[%s3 + $0x3c] sm:$0xf]
      %v1316 = vld [vmem:[%s3 + $0x40] sm:$0xf]
      %v1317 = vld [vmem:[%s3 + $0x44] sm:$0xf]
      %v1318 = vld [vmem:[%s3 + $0x48] sm:$0xf]
      %v1319 = vld [vmem:[%s3 + $0x4c] sm:$0xf]
      %v1320 = vld [vmem:[%s3 + $0x50] sm:$0xf]
      %v1321 = vld [vmem:[%s3 + $0x54] sm:$0xf]
      %v1322 = vld [vmem:[%s3 + $0x58] sm:$0xf]
      %v1323 = vld [vmem:[%s3 + $0x5c] sm:$0xf]
      %v1324 = vld [vmem:[%s3 + $0x60] sm:$0xf]
      %v1325 = vld [vmem:[%s3 + $0x64] sm:$0xf]
      %v1326 = vld [vmem:[%s3 + $0x68] sm:$0xf]
      %v1327 = vld [vmem:[%s3 + $0x6c] sm:$0xf]
      %v1328 = vld [vmem:[%s3 + $0x70] sm:$0xf]
      %v1329 = vld [vmem:[%s3 + $0x74] sm:$0xf]
      %v1330 = vld [vmem:[%s3 + $0x78] sm:$0xf]
      %v1331 = vld [vmem:[%s3 + $0x7c] sm:$0xf]
      %v1332 = vld [vmem:[%s3 + $0x80] sm:$0xf]
      %v1333 = vld [vmem:[%s3 + $0x84] sm:$0xf]
      %v1334 = vld [vmem:[%s3 + $0x88] sm:$0xf]
      %v1335 = vld [vmem:[%s3 + $0x8c] sm:$0xf]
      %v1336 = vld [vmem:[%s5 + $0x6] sm:$0x1]
      %v1337 = vld [vmem:[%s5 + $0x7] sm:$0x1]
      %v1338 = vld [vmem:[%s5 + $0x8] sm:$0x1]
      %v1339 = vlaneseq
      %v1340 = vshrl.u32 %v1339, 7
      %v1341 = vsub.s32 0, %v1340
      %v1342 = vrot.slane %v1336, %v1341
      %v1379 = vunpack.c.l.b16 %v1300
      %v1380 = vunpack.c.l.b16 %v1301
      %v1381 = vunpack.c.l.b16 %v1302
      %v1382 = vunpack.c.l.b16 %v1303
      %v1383 = vunpack.c.l.b16 %v1304
      %v1384 = vunpack.c.l.b16 %v1305
      %v1385 = vunpack.c.l.b16 %v1306
      %v1386 = vunpack.c.l.b16 %v1307
      %v1387 = vunpack.c.l.b16 %v1308
      %v1388 = vunpack.c.l.b16 %v1309
      %v1389 = vunpack.c.l.b16 %v1310
      %v1390 = vunpack.c.l.b16 %v1311
      %v1391 = vunpack.c.l.b16 %v1312
      %v1392 = vunpack.c.l.b16 %v1313
      %v1393 = vunpack.c.l.b16 %v1314
      %v1394 = vunpack.c.l.b16 %v1315
      %v1395 = vunpack.c.l.b16 %v1316
      %v1396 = vunpack.c.l.b16 %v1317
      %v1397 = vunpack.c.l.b16 %v1318
      %v1398 = vunpack.c.l.b16 %v1319
      %v1399 = vunpack.c.l.b16 %v1320
      %v1400 = vunpack.c.l.b16 %v1321
      %v1401 = vunpack.c.l.b16 %v1322
      %v1402 = vunpack.c.l.b16 %v1323
      %v1403 = vunpack.c.l.b16 %v1324
      %v1404 = vunpack.c.l.b16 %v1325
      %v1405 = vunpack.c.l.b16 %v1326
      %v1406 = vunpack.c.l.b16 %v1327
      %v1407 = vunpack.c.l.b16 %v1328
      %v1408 = vunpack.c.l.b16 %v1329
      %v1409 = vunpack.c.l.b16 %v1330
      %v1410 = vunpack.c.l.b16 %v1331
      %v1411 = vunpack.c.l.b16 %v1332
      %v1412 = vunpack.c.l.b16 %v1333
      %v1413 = vunpack.c.l.b16 %v1334
      %v1414 = vunpack.c.l.b16 %v1335
      %v1415 = vpack.c.b16 %v1380, %v1379
      %v1416 = vpack.c.b16 %v1382, %v1381
      %v1417 = vpack.c.b16 %v1384, %v1383
      %v1418 = vpack.c.b16 %v1386, %v1385
      %v1419 = vpack.c.b16 %v1388, %v1387
      %v1420 = vpack.c.b16 %v1390, %v1389
      %v1421 = vpack.c.b16 %v1392, %v1391
      %v1422 = vpack.c.b16 %v1394, %v1393
      %v1423 = vpack.c.b16 %v1396, %v1395
      %v1424 = vpack.c.b16 %v1398, %v1397
      %v1425 = vpack.c.b16 %v1400, %v1399
      %v1426 = vpack.c.b16 %v1402, %v1401
      %v1427 = vpack.c.b16 %v1404, %v1403
      %v1428 = vpack.c.b16 %v1406, %v1405
      %v1429 = vpack.c.b16 %v1408, %v1407
      %v1430 = vpack.c.b16 %v1410, %v1409
      %v1431 = vpack.c.b16 %v1412, %v1411
      %v1432 = vpack.c.b16 %v1414, %v1413
      %v1452 = vsel %vm655, %v1299, 0
      %1454 = vmatprep.subr.bf16.mxu0 0
      %1455 = vmatpush1.bf16.msra.mxu0 %v1415
      %1456 = vmatprep.subr.bf16.mxu0 0
      %1457 = vmatpush1.bf16.msra.mxu0 %v1416
      %1458 = vmatprep.subr.bf16.mxu0 0
      %1459 = vmatpush1.bf16.msra.mxu0 %v1417
      %1460 = vmatprep.subr.bf16.mxu0 0
      %1461 = vmatpush1.bf16.msra.mxu0 %v1418
      %1462 = vmatprep.subr.bf16.mxu0 0
      %1463 = vmatpush1.bf16.msra.mxu0 %v1419
      %1464 = vmatprep.subr.bf16.mxu0 0
      %1465 = vmatpush1.bf16.msra.mxu0 %v1420
      %1466 = vmatprep.subr.bf16.mxu0 0
      %1467 = vmatpush1.bf16.msra.mxu0 %v1421
      %1468 = vmatprep.subr.bf16.mxu0 0
      %1469 = vmatpush1.bf16.msra.mxu0 %v1422
      %1470 = vmatprep.subr.bf16.mxu0 0
      %1471 = vmatpush1.bf16.msra.mxu0 %v1423
      %1472 = vmatprep.subr.bf16.mxu0 0
      %1473 = vmatpush1.bf16.msra.mxu0 %v1424
      %1474 = vmatprep.subr.bf16.mxu0 0
      %1475 = vmatpush1.bf16.msra.mxu0 %v1425
      %1476 = vmatprep.subr.bf16.mxu0 0
      %1477 = vmatpush1.bf16.msra.mxu0 %v1426
      %1478 = vmatprep.subr.bf16.mxu0 0
      %1479 = vmatpush1.bf16.msra.mxu0 %v1427
      %1480 = vmatprep.subr.bf16.mxu0 0
      %1481 = vmatpush1.bf16.msra.mxu0 %v1428
      %1482 = vmatprep.subr.bf16.mxu0 0
      %1483 = vmatpush1.bf16.msra.mxu0 %v1429
      %1484 = vmatprep.subr.bf16.mxu0 0
      %1485 = vmatpush1.bf16.msra.mxu0 %v1430
      %1486 = vmatprep.mubr.bf16.mxu0 %v1298
      %1487 = vmatmul.mubr.bf16.gmra.mrb[0].mxu0 %v1297
      %v1488 = vpop.f32.mrb[0].mxu0
      %v1489 = vadd.f32 %v1342, %v1488
      %v1490 = vpop.f32.mrb[0].mxu0
      %v1491 = vpop.f32.mrb[0].mxu0
      %v1492 = vpop.f32.mrb[0].mxu0
      %1493 = vdwg.mxu0
      %1494 = vmatprep.subr.bf16.mxu0 0
      %1495 = vmatpush1.bf16.msra.mxu0 %v1431
      %1496 = vmatprep.subr.bf16.mxu0 0
      %1497 = vmatpush1.bf16.msra.mxu0 %v1432
      %1498 = vmatprep.subr.bf16.mxu0 0
      %1499 = vmatpush1.bf16.msra.mxu0 0
      %1500 = vmatprep.subr.bf16.mxu0 0
      %1501 = vmatpush1.bf16.msra.mxu0 0
      %1502 = vmatprep.subr.bf16.mxu0 0
      %1503 = vmatpush1.bf16.msra.mxu0 0
      %1504 = vmatprep.subr.bf16.mxu0 0
      %1505 = vmatpush1.bf16.msra.mxu0 0
      %1506 = vmatprep.subr.bf16.mxu0 0
      %1507 = vmatpush1.bf16.msra.mxu0 0
      %1508 = vmatprep.subr.bf16.mxu0 0
      %1509 = vmatpush1.bf16.msra.mxu0 0
      %1510 = vmatprep.subr.bf16.mxu0 0
      %1511 = vmatpush1.bf16.msra.mxu0 0
      %1512 = vmatprep.subr.bf16.mxu0 0
      %1513 = vmatpush1.bf16.msra.mxu0 0
      %1514 = vmatprep.subr.bf16.mxu0 0
      %1515 = vmatpush1.bf16.msra.mxu0 0
      %1516 = vmatprep.subr.bf16.mxu0 0
      %1517 = vmatpush1.bf16.msra.mxu0 0
      %1518 = vmatprep.subr.bf16.mxu0 0
      %1519 = vmatpush1.bf16.msra.mxu0 0
      %1520 = vmatprep.subr.bf16.mxu0 0
      %1521 = vmatpush1.bf16.msra.mxu0 0
      %1522 = vmatprep.subr.bf16.mxu0 0
      %1523 = vmatpush1.bf16.msra.mxu0 0
      %1524 = vmatprep.subr.bf16.mxu0 0
      %1525 = vmatpush1.bf16.msra.mxu0 0
      %1526 = vmatprep.mubr.bf16.mxu0 0
      %1527 = vmatmul.mubr.bf16.gmra.mrb[0].mxu0 %v1452
      %v1528 = vpop.f32.mrb[0].mxu0
      %v1529 = vadd.f32 %v1489, %v1528
      %v1530 = vpop.f32.mrb[0].mxu0
      %v1531 = vpop.f32.mrb[0].mxu0
      %v1532 = vpop.f32.mrb[0].mxu0
      %1533 = vdwg.mxu0
      %vm1534 = vcmp.ge.f32.partialorder %v1529, 0.0
      %v1535 = vmul.f32 %v1529, 0.2
      %v1536 = vsel %vm1534, %v1529, %v1535
      %v1537 = vlaneseq
      %v1538 = vshrl.u32 %v1537, 7
      %v1539 = vsub.s32 0, %v1538
      %v1540 = vrot.slane %v1337, %v1539
      %v1541 = vmul.f32 %v1536, %v1540
      %v1542 = vlaneseq
      %v1543 = vshrl.u32 %v1542, 7
      %v1544 = vsub.s32 0, %v1543
      %v1545 = vrot.slane %v1338, %v1544
      %v1546 = vadd.f32 %v1541, %v1545
      %1547 = vst.msk [vmem:[#allocation4] sm:$0xff] %vm1036, 0.0
      %1548 = vst.msk [vmem:[#allocation4 + $0x8] sm:$0xff] %vm1036, 0.0
      %vm1549 = vcmask 517120
      %1550 = vst.msk [vmem:[#allocation4 + $0x5] sm:$0x3] %vm1549, %v1546
      %vm1551 = vcmask 519170
      %1552 = vst.msk [vmem:[#allocation4 + $0x7] sm:$0xc] %vm1551, %v1546
      %v1553 = vld [vmem:[#allocation4] sm:$0x1]
      %v1554 = vld [vmem:[#allocation4 + $0x1] sm:$0x1]
      %v1555 = vld [vmem:[#allocation4 + $0x2] sm:$0x1]
      %v1556 = vld [vmem:[#allocation4 + $0x4] sm:$0x1]
      %v1557 = vld [vmem:[#allocation4 + $0x5] sm:$0x1]
      %v1558 = vld [vmem:[#allocation4 + $0x6] sm:$0x1]
      %v1559 = vld [vmem:[#allocation4 + $0x8] sm:$0x1]
      %v1560 = vld [vmem:[#allocation4 + $0x9] sm:$0x1]
      %v1561 = vld [vmem:[#allocation4 + $0xa] sm:$0x1]
      %1563 = vrot.lane.b32.xlu0 %v1554, 64
      %v1564 = vpop.permute.xlu0 %1563
      %1567 = vrot.lane.b32.xlu0 %v1556, 64
      %v1568 = vpop.permute.xlu0 %1567
      %1571 = vrot.lane.b32.xlu0 %v1558, 64
      %v1572 = vpop.permute.xlu0 %1571
      %1575 = vrot.lane.b32.xlu0 %v1560, 64
      %v1576 = vpop.permute.xlu0 %1575
      %v1578 = vsel %vm1036, %v1553, %v1564
      %v1579 = vsel %vm1036, %v1555, %v1568
      %v1580 = vsel %vm1036, %v1557, %v1572
      %v1581 = vsel %vm1036, %v1559, %v1576
      %v1582 = vpack.c.bf16 %v1578, %v1578
      %v1583 = vpack.c.bf16 %v1579, %v1579
      %v1584 = vpack.c.bf16 %v1580, %v1580
      %v1585 = vpack.c.bf16 %v1581, %v1581
      %v1586 = vpack.c.bf16 %v1561, %v1561
      %v1587 = vld [vmem:[%s4] sm:$0xf]
      %v1588 = vld [vmem:[%s4 + $0x4] sm:$0xf]
      %v1589 = vld [vmem:[%s4 + $0x8] sm:$0xf]
      %v1590 = vld [vmem:[%s4 + $0xc] sm:$0xf]
      %v1591 = vld [vmem:[%s4 + $0x10] sm:$0xf]
      %v1592 = vld [vmem:[%s4 + $0x14] sm:$0xf]
      %v1593 = vld [vmem:[%s4 + $0x18] sm:$0xf]
      %v1594 = vld [vmem:[%s4 + $0x1c] sm:$0xf]
      %v1595 = vld [vmem:[%s4 + $0x20] sm:$0xf]
      %v1596 = vld [vmem:[%s4 + $0x24] sm:$0xf]
      %v1597 = vld [vmem:[%s4 + $0x28] sm:$0xf]
      %v1598 = vld [vmem:[%s4 + $0x2c] sm:$0xf]
      %v1599 = vld [vmem:[%s4 + $0x30] sm:$0xf]
      %v1600 = vld [vmem:[%s4 + $0x34] sm:$0xf]
      %v1601 = vld [vmem:[%s4 + $0x38] sm:$0xf]
      %v1602 = vld [vmem:[%s4 + $0x3c] sm:$0xf]
      %v1603 = vld [vmem:[%s4 + $0x40] sm:$0xf]
      %v1604 = vld [vmem:[%s4 + $0x44] sm:$0xf]
      %v1605 = vld [vmem:[%s4 + $0x48] sm:$0xf]
      %v1606 = vld [vmem:[%s4 + $0x4c] sm:$0xf]
      %v1607 = vld [vmem:[%s4 + $0x50] sm:$0xf]
      %v1608 = vld [vmem:[%s4 + $0x54] sm:$0xf]
      %v1609 = vld [vmem:[%s4 + $0x58] sm:$0xf]
      %v1610 = vld [vmem:[%s4 + $0x5c] sm:$0xf]
      %v1611 = vld [vmem:[%s4 + $0x60] sm:$0xf]
      %v1612 = vld [vmem:[%s4 + $0x64] sm:$0xf]
      %v1613 = vld [vmem:[%s4 + $0x68] sm:$0xf]
      %v1614 = vld [vmem:[%s4 + $0x6c] sm:$0xf]
      %v1615 = vld [vmem:[%s4 + $0x70] sm:$0xf]
      %v1616 = vld [vmem:[%s4 + $0x74] sm:$0xf]
      %v1617 = vld [vmem:[%s4 + $0x78] sm:$0xf]
      %v1618 = vld [vmem:[%s4 + $0x7c] sm:$0xf]
      %v1619 = vld [vmem:[%s4 + $0x80] sm:$0xf]
      %v1620 = vld [vmem:[%s4 + $0x84] sm:$0xf]
      %v1621 = vld [vmem:[%s4 + $0x88] sm:$0xf]
      %v1622 = vld [vmem:[%s4 + $0x8c] sm:$0xf]
      %v1623 = vld [vmem:[%s4 + $0x90] sm:$0xf]
      %v1624 = vld [vmem:[%s4 + $0x94] sm:$0xf]
      %v1625 = vld [vmem:[%s4 + $0x98] sm:$0xf]
      %v1626 = vld [vmem:[%s4 + $0x9c] sm:$0xf]
      %v1627 = vld [vmem:[%s4 + $0xa0] sm:$0xf]
      %v1628 = vld [vmem:[%s4 + $0xa4] sm:$0xf]
      %v1629 = vld [vmem:[%s4 + $0xa8] sm:$0xf]
      %v1630 = vld [vmem:[%s4 + $0xac] sm:$0xf]
      %v1631 = vld [vmem:[%s4 + $0xb0] sm:$0xf]
      %v1632 = vld [vmem:[%s4 + $0xb4] sm:$0xf]
      %v1633 = vld [vmem:[%s4 + $0xb8] sm:$0xf]
      %v1634 = vld [vmem:[%s4 + $0xbc] sm:$0xf]
      %v1635 = vld [vmem:[%s4 + $0xc0] sm:$0xf]
      %v1636 = vld [vmem:[%s4 + $0xc4] sm:$0xf]
      %v1637 = vld [vmem:[%s4 + $0xc8] sm:$0xf]
      %v1638 = vld [vmem:[%s4 + $0xcc] sm:$0xf]
      %v1639 = vld [vmem:[%s4 + $0xd0] sm:$0xf]
      %v1640 = vld [vmem:[%s4 + $0xd4] sm:$0xf]
      %v1641 = vld [vmem:[%s4 + $0xd8] sm:$0xf]
      %v1642 = vld [vmem:[%s4 + $0xdc] sm:$0xf]
      %v1643 = vld [vmem:[%s4 + $0xe0] sm:$0xf]
      %v1644 = vld [vmem:[%s4 + $0xe4] sm:$0xf]
      %v1645 = vld [vmem:[%s4 + $0xe8] sm:$0xf]
      %v1646 = vld [vmem:[%s4 + $0xec] sm:$0xf]
      %v1647 = vld [vmem:[%s4 + $0xf0] sm:$0xf]
      %v1648 = vld [vmem:[%s4 + $0xf4] sm:$0xf]
      %v1649 = vld [vmem:[%s4 + $0xf8] sm:$0xf]
      %v1650 = vld [vmem:[%s4 + $0xfc] sm:$0xf]
      %v1651 = vld [vmem:[%s4 + $0x100] sm:$0xf]
      %v1652 = vld [vmem:[%s4 + $0x104] sm:$0xf]
      %v1653 = vld [vmem:[%s4 + $0x108] sm:$0xf]
      %v1654 = vld [vmem:[%s4 + $0x10c] sm:$0xf]
      %v1655 = vld [vmem:[%s4 + $0x110] sm:$0xf]
      %v1656 = vld [vmem:[%s4 + $0x114] sm:$0xf]
      %v1657 = vld [vmem:[%s4 + $0x118] sm:$0xf]
      %v1658 = vld [vmem:[%s4 + $0x11c] sm:$0xf]
      %v1659 = vld [vmem:[%s5 + $0x9] sm:$0x1]
      %v1660 = vld [vmem:[%s5 + $0xa] sm:$0x1]
      %v1661 = vld [vmem:[%s5 + $0xb] sm:$0x1]
      %v1734 = vunpack.c.l.b16 %v1587
      %v1735 = vunpack.c.l.b16 %v1588
      %v1736 = vunpack.c.l.b16 %v1589
      %v1737 = vunpack.c.l.b16 %v1590
      %v1738 = vunpack.c.l.b16 %v1591
      %v1739 = vunpack.c.l.b16 %v1592
      %v1740 = vunpack.c.l.b16 %v1593
      %v1741 = vunpack.c.l.b16 %v1594
      %v1742 = vunpack.c.l.b16 %v1595
      %v1743 = vunpack.c.l.b16 %v1596
      %v1744 = vunpack.c.l.b16 %v1597
      %v1745 = vunpack.c.l.b16 %v1598
      %v1746 = vunpack.c.l.b16 %v1599
      %v1747 = vunpack.c.l.b16 %v1600
      %v1748 = vunpack.c.l.b16 %v1601
      %v1749 = vunpack.c.l.b16 %v1602
      %v1750 = vunpack.c.l.b16 %v1603
      %v1751 = vunpack.c.l.b16 %v1604
      %v1752 = vunpack.c.l.b16 %v1605
      %v1753 = vunpack.c.l.b16 %v1606
      %v1754 = vunpack.c.l.b16 %v1607
      %v1755 = vunpack.c.l.b16 %v1608
      %v1756 = vunpack.c.l.b16 %v1609
      %v1757 = vunpack.c.l.b16 %v1610
      %v1758 = vunpack.c.l.b16 %v1611
      %v1759 = vunpack.c.l.b16 %v1612
      %v1760 = vunpack.c.l.b16 %v1613
      %v1761 = vunpack.c.l.b16 %v1614
      %v1762 = vunpack.c.l.b16 %v1615
      %v1763 = vunpack.c.l.b16 %v1616
      %v1764 = vunpack.c.l.b16 %v1617
      %v1765 = vunpack.c.l.b16 %v1618
      %v1766 = vunpack.c.l.b16 %v1619
      %v1767 = vunpack.c.l.b16 %v1620
      %v1768 = vunpack.c.l.b16 %v1621
      %v1769 = vunpack.c.l.b16 %v1622
      %v1770 = vunpack.c.l.b16 %v1623
      %v1771 = vunpack.c.l.b16 %v1624
      %v1772 = vunpack.c.l.b16 %v1625
      %v1773 = vunpack.c.l.b16 %v1626
      %v1774 = vunpack.c.l.b16 %v1627
      %v1775 = vunpack.c.l.b16 %v1628
      %v1776 = vunpack.c.l.b16 %v1629
      %v1777 = vunpack.c.l.b16 %v1630
      %v1778 = vunpack.c.l.b16 %v1631
      %v1779 = vunpack.c.l.b16 %v1632
      %v1780 = vunpack.c.l.b16 %v1633
      %v1781 = vunpack.c.l.b16 %v1634
      %v1782 = vunpack.c.l.b16 %v1635
      %v1783 = vunpack.c.l.b16 %v1636
      %v1784 = vunpack.c.l.b16 %v1637
      %v1785 = vunpack.c.l.b16 %v1638
      %v1786 = vunpack.c.l.b16 %v1639
      %v1787 = vunpack.c.l.b16 %v1640
      %v1788 = vunpack.c.l.b16 %v1641
      %v1789 = vunpack.c.l.b16 %v1642
      %v1790 = vunpack.c.l.b16 %v1643
      %v1791 = vunpack.c.l.b16 %v1644
      %v1792 = vunpack.c.l.b16 %v1645
      %v1793 = vunpack.c.l.b16 %v1646
      %v1794 = vunpack.c.l.b16 %v1647
      %v1795 = vunpack.c.l.b16 %v1648
      %v1796 = vunpack.c.l.b16 %v1649
      %v1797 = vunpack.c.l.b16 %v1650
      %v1798 = vunpack.c.l.b16 %v1651
      %v1799 = vunpack.c.l.b16 %v1652
      %v1800 = vunpack.c.l.b16 %v1653
      %v1801 = vunpack.c.l.b16 %v1654
      %v1802 = vunpack.c.l.b16 %v1655
      %v1803 = vunpack.c.l.b16 %v1656
      %v1804 = vunpack.c.l.b16 %v1657
      %v1805 = vunpack.c.l.b16 %v1658
      %v1806 = vpack.c.b16 %v1735, %v1734
      %v1807 = vpack.c.b16 %v1737, %v1736
      %v1808 = vpack.c.b16 %v1739, %v1738
      %v1809 = vpack.c.b16 %v1741, %v1740
      %v1810 = vpack.c.b16 %v1743, %v1742
      %v1811 = vpack.c.b16 %v1745, %v1744
      %v1812 = vpack.c.b16 %v1747, %v1746
      %v1813 = vpack.c.b16 %v1749, %v1748
      %v1814 = vpack.c.b16 %v1751, %v1750
      %v1815 = vpack.c.b16 %v1753, %v1752
      %v1816 = vpack.c.b16 %v1755, %v1754
      %v1817 = vpack.c.b16 %v1757, %v1756
      %v1818 = vpack.c.b16 %v1759, %v1758
      %v1819 = vpack.c.b16 %v1761, %v1760
      %v1820 = vpack.c.b16 %v1763, %v1762
      %v1821 = vpack.c.b16 %v1765, %v1764
      %v1822 = vpack.c.b16 %v1767, %v1766
      %v1823 = vpack.c.b16 %v1769, %v1768
      %v1824 = vpack.c.b16 %v1771, %v1770
      %v1825 = vpack.c.b16 %v1773, %v1772
      %v1826 = vpack.c.b16 %v1775, %v1774
      %v1827 = vpack.c.b16 %v1777, %v1776
      %v1828 = vpack.c.b16 %v1779, %v1778
      %v1829 = vpack.c.b16 %v1781, %v1780
      %v1830 = vpack.c.b16 %v1783, %v1782
      %v1831 = vpack.c.b16 %v1785, %v1784
      %v1832 = vpack.c.b16 %v1787, %v1786
      %v1833 = vpack.c.b16 %v1789, %v1788
      %v1834 = vpack.c.b16 %v1791, %v1790
      %v1835 = vpack.c.b16 %v1793, %v1792
      %v1836 = vpack.c.b16 %v1795, %v1794
      %v1837 = vpack.c.b16 %v1797, %v1796
      %v1838 = vpack.c.b16 %v1799, %v1798
      %v1839 = vpack.c.b16 %v1801, %v1800
      %v1840 = vpack.c.b16 %v1803, %v1802
      %v1841 = vpack.c.b16 %v1805, %v1804
      %v1879 = vsel %vm1036, %v1586, 0
      %1881 = vmatprep.subr.bf16.mxu0 0
      %1882 = vmatpush1.bf16.msra.mxu0 %v1806
      %1883 = vmatprep.subr.bf16.mxu0 0
      %1884 = vmatpush1.bf16.msra.mxu0 %v1807
      %1885 = vmatprep.subr.bf16.mxu0 0
      %1886 = vmatpush1.bf16.msra.mxu0 %v1808
      %1887 = vmatprep.subr.bf16.mxu0 0
      %1888 = vmatpush1.bf16.msra.mxu0 %v1809
      %1889 = vmatprep.subr.bf16.mxu0 0
      %1890 = vmatpush1.bf16.msra.mxu0 %v1810
      %1891 = vmatprep.subr.bf16.mxu0 0
      %1892 = vmatpush1.bf16.msra.mxu0 %v1811
      %1893 = vmatprep.subr.bf16.mxu0 0
      %1894 = vmatpush1.bf16.msra.mxu0 %v1812
      %1895 = vmatprep.subr.bf16.mxu0 0
      %1896 = vmatpush1.bf16.msra.mxu0 %v1813
      %1897 = vmatprep.subr.bf16.mxu0 0
      %1898 = vmatpush1.bf16.msra.mxu0 %v1814
      %1899 = vmatprep.subr.bf16.mxu0 0
      %1900 = vmatpush1.bf16.msra.mxu0 %v1815
      %1901 = vmatprep.subr.bf16.mxu0 0
      %1902 = vmatpush1.bf16.msra.mxu0 %v1816
      %1903 = vmatprep.subr.bf16.mxu0 0
      %1904 = vmatpush1.bf16.msra.mxu0 %v1817
      %1905 = vmatprep.subr.bf16.mxu0 0
      %1906 = vmatpush1.bf16.msra.mxu0 %v1818
      %1907 = vmatprep.subr.bf16.mxu0 0
      %1908 = vmatpush1.bf16.msra.mxu0 %v1819
      %1909 = vmatprep.subr.bf16.mxu0 0
      %1910 = vmatpush1.bf16.msra.mxu0 %v1820
      %1911 = vmatprep.subr.bf16.mxu0 0
      %1912 = vmatpush1.bf16.msra.mxu0 %v1821
      %1913 = vmatprep.mubr.bf16.mxu0 %v1583
      %1914 = vmatmul.mubr.bf16.gmra.mrb[0].mxu0 %v1582
      %v1915 = vpop.f32.mrb[0].mxu0
      %v1916 = vadd.f32 %v1659, %v1915
      %v1917 = vpop.f32.mrb[0].mxu0
      %v1918 = vpop.f32.mrb[0].mxu0
      %v1919 = vpop.f32.mrb[0].mxu0
      %1920 = vdwg.mxu0
      %1921 = vmatprep.subr.bf16.mxu0 0
      %1922 = vmatpush1.bf16.msra.mxu0 %v1822
      %1923 = vmatprep.subr.bf16.mxu0 0
      %1924 = vmatpush1.bf16.msra.mxu0 %v1823
      %1925 = vmatprep.subr.bf16.mxu0 0
      %1926 = vmatpush1.bf16.msra.mxu0 %v1824
      %1927 = vmatprep.subr.bf16.mxu0 0
      %1928 = vmatpush1.bf16.msra.mxu0 %v1825
      %1929 = vmatprep.subr.bf16.mxu0 0
      %1930 = vmatpush1.bf16.msra.mxu0 %v1826
      %1931 = vmatprep.subr.bf16.mxu0 0
      %1932 = vmatpush1.bf16.msra.mxu0 %v1827
      %1933 = vmatprep.subr.bf16.mxu0 0
      %1934 = vmatpush1.bf16.msra.mxu0 %v1828
      %1935 = vmatprep.subr.bf16.mxu0 0
      %1936 = vmatpush1.bf16.msra.mxu0 %v1829
      %1937 = vmatprep.subr.bf16.mxu0 0
      %1938 = vmatpush1.bf16.msra.mxu0 %v1830
      %1939 = vmatprep.subr.bf16.mxu0 0
      %1940 = vmatpush1.bf16.msra.mxu0 %v1831
      %1941 = vmatprep.subr.bf16.mxu0 0
      %1942 = vmatpush1.bf16.msra.mxu0 %v1832
      %1943 = vmatprep.subr.bf16.mxu0 0
      %1944 = vmatpush1.bf16.msra.mxu0 %v1833
      %1945 = vmatprep.subr.bf16.mxu0 0
      %1946 = vmatpush1.bf16.msra.mxu0 %v1834
      %1947 = vmatprep.subr.bf16.mxu0 0
      %1948 = vmatpush1.bf16.msra.mxu0 %v1835
      %1949 = vmatprep.subr.bf16.mxu0 0
      %1950 = vmatpush1.bf16.msra.mxu0 %v1836
      %1951 = vmatprep.subr.bf16.mxu0 0
      %1952 = vmatpush1.bf16.msra.mxu0 %v1837
      %1953 = vmatprep.mubr.bf16.mxu0 %v1585
      %1954 = vmatmul.mubr.bf16.gmra.mrb[0].mxu0 %v1584
      %v1955 = vpop.f32.mrb[0].mxu0
      %v1956 = vadd.f32 %v1916, %v1955
      %v1957 = vpop.f32.mrb[0].mxu0
      %v1958 = vpop.f32.mrb[0].mxu0
      %v1959 = vpop.f32.mrb[0].mxu0
      %1960 = vdwg.mxu0
      %1961 = vmatprep.subr.bf16.mxu0 0
      %1962 = vmatpush1.bf16.msra.mxu0 %v1838
      %1963 = vmatprep.subr.bf16.mxu0 0
      %1964 = vmatpush1.bf16.msra.mxu0 %v1839
      %1965 = vmatprep.subr.bf16.mxu0 0
      %1966 = vmatpush1.bf16.msra.mxu0 %v1840
      %1967 = vmatprep.subr.bf16.mxu0 0
      %1968 = vmatpush1.bf16.msra.mxu0 %v1841
      %1969 = vmatprep.subr.bf16.mxu0 0
      %1970 = vmatpush1.bf16.msra.mxu0 0
      %1971 = vmatprep.subr.bf16.mxu0 0
      %1972 = vmatpush1.bf16.msra.mxu0 0
      %1973 = vmatprep.subr.bf16.mxu0 0
      %1974 = vmatpush1.bf16.msra.mxu0 0
      %1975 = vmatprep.subr.bf16.mxu0 0
      %1976 = vmatpush1.bf16.msra.mxu0 0
      %1977 = vmatprep.subr.bf16.mxu0 0
      %1978 = vmatpush1.bf16.msra.mxu0 0
      %1979 = vmatprep.subr.bf16.mxu0 0
      %1980 = vmatpush1.bf16.msra.mxu0 0
      %1981 = vmatprep.subr.bf16.mxu0 0
      %1982 = vmatpush1.bf16.msra.mxu0 0
      %1983 = vmatprep.subr.bf16.mxu0 0
      %1984 = vmatpush1.bf16.msra.mxu0 0
      %1985 = vmatprep.subr.bf16.mxu0 0
      %1986 = vmatpush1.bf16.msra.mxu0 0
      %1987 = vmatprep.subr.bf16.mxu0 0
      %1988 = vmatpush1.bf16.msra.mxu0 0
      %1989 = vmatprep.subr.bf16.mxu0 0
      %1990 = vmatpush1.bf16.msra.mxu0 0
      %1991 = vmatprep.subr.bf16.mxu0 0
      %1992 = vmatpush1.bf16.msra.mxu0 0
      %1993 = vmatprep.mubr.bf16.mxu0 0
      %1994 = vmatmul.mubr.bf16.gmra.mrb[0].mxu0 %v1879
      %v1995 = vpop.f32.mrb[0].mxu0
      %v1996 = vadd.f32 %v1956, %v1995
      %v1997 = vpop.f32.mrb[0].mxu0
      %v1998 = vpop.f32.mrb[0].mxu0
      %v1999 = vpop.f32.mrb[0].mxu0
      %2000 = vdwg.mxu0
      %vm2001 = vcmp.ge.f32.partialorder %v1996, 0.0
      %v2002 = vmul.f32 %v1996, 0.2
      %v2003 = vsel %vm2001, %v1996, %v2002
      %v2004 = vmul.f32 %v2003, %v1660
      %v2005 = vadd.f32 %v2004, %v1661
      %v2006 = vld [vmem:[%s5 + $0xd] sm:$0x1]
      %v2007 = vmul.f32 %v2005, %v2006
      %vm2008 = vcmask 1040384
      %v2009 = vsel %vm2008, %v2007, 0.0
      %2010 = vadd.xlane.f32.xlu0 %v2009
      %v2011 = vpop.xlane.xlu0 %2010
      %v2012 = vadd.f32 %v2011, 0.0
      %v2013 = vld [vmem:[%s5 + $0xc] sm:$0x1]
      %v2014 = vadd.f32 %v2012, %v2013
      %v2015 = vxor.u32 %v2014, 2147483648
      %v2016 = vmul.f32 %v2015, 1.442695
      %v2017 = vpow.pop %v2016
      %v2018 = vadd.f32 %v2017, 1.0
      %v2019 = vrcp.pop %v2018
      %v2020 = vmul.f32 1.0, %v2019
      %vm2021 = vcmask 0
      %2022 = vst.msk [vmem:[%s247] sm:$0x1] %vm2021, %v2020
      %p2023 = scmp.lt.s32.totalorder %s17, 1
      %s2024 = scalar_select %p2023, %s17, 1
      %s2025 = scalar_lea.vmem %s6, %s2024
      // Predicated region
      $region45: #{tpu_custom_call.1} parent=43 // pred_check
        %p2026 = pneg %p166
      $region46: #{tpu_custom_call.1} parent=43 // pred_check_branch
        %2028 = sbr.rel (%p2026) target = $region48
      $region47: #{tpu_custom_call.1} parent=43 // pred_region
        _
      $region48: #{tpu_custom_call.1} parent=43 // pred_fallthru
        _
    $region44: #{tpu_custom_call.1} parent=5 // pred_fallthru
      _
    %p2029 = scmp.le.s32.totalorder 2, %s12
    // Predicated region
    $region49: #{tpu_custom_call.1} parent=5 // pred_check
      %p2030 = pneg %p2029
    $region50: #{tpu_custom_call.1} parent=5 // pred_check_branch
      %2032 = sbr.rel (%p2030) target = $region52
    $region51: #{tpu_custom_call.1} parent=5 // pred_region
      %s2033 = ssub.s32 %s12, 2
      // Predicated region
      $region53: #{tpu_custom_call.1} parent=51 // pred_check
        %p2034 = pneg %p172
      $region54: #{tpu_custom_call.1} parent=51 // pred_check_branch
        %2036 = sbr.rel (%p2034) target = $region56
      $region55: #{tpu_custom_call.1} parent=51 // pred_region
        %p2037 = scmp.lt.s32.totalorder %s18, 1
        %s2038 = scalar_select %p2037, %s18, 1
        %s2039 = scalar_lea.vmem %s6, %s2038
      $region56: #{tpu_custom_call.1} parent=51 // pred_fallthru
        _
    $region52: #{tpu_custom_call.1} parent=5 // pred_fallthru
      _
  $region6: #{tpu_custom_call.1} parent=0 // loop_footer
    %s16 = sadd.s32 1, %s12
  $region7: #{tpu_custom_call.1} parent=0 // loop_footer_branch
    %11 = sbr.rel target = $region3
  $region8: #{tpu_custom_call.1} parent=0 // loop_exit
    _

</llo_original>
